<compile_context>
chip_gen: v5e
topology: v5e:2x2
jax: 0.10.0
libtpu: 0.0.40
codegen_flags: <defaults>
</compile_context>

<pallas_src>
import math
from functools import partial

import jax
import jax.numpy as jnp
from jax.experimental import pallas as pl
from jax.experimental.pallas import tpu as pltpu

# ---------------- module-consistent configuration ----------------
IMAGE_SIZE = 16
PATCH_SIZE = 8
WIDTH = 32          # d_model
LAYERS = 2
HEADS = 4
MLP_RATIO = 4.0
OUTPUT_DIM = 16
BATCH = 2
EPS = 1e-5          # nn.LayerNorm default eps

GRID = IMAGE_SIZE // PATCH_SIZE          # 2
SEQ = GRID * GRID + 1                    # 5 tokens (cls + patches)
HEAD_DIM = WIDTH // HEADS                # 8
MLP_WIDTH = int(WIDTH * MLP_RATIO)       # 128
CPP = 3 * PATCH_SIZE * PATCH_SIZE        # flattened patch length (cin*kh*kw)

LANES = 128                              # TPU lane width
OUT_SUBLANES = 8                         # lane-dense padded output rows


def _round_up(n, m):
    return (n + m - 1) // m * m


# ---------------------------- in-kernel helpers ----------------------------
def _erf_f32(x):
    # Abramowitz & Stegun 7.1.26 rational approximation, |err| < 1.5e-7.
    a1, a2, a3, a4, a5 = 0.254829592, -0.284496736, 1.421413741, -1.453152027, 1.061405429
    p = 0.3275911
    sgn = jnp.where(x >= 0.0, 1.0, -1.0)
    ax = jnp.abs(x)
    t = 1.0 / (1.0 + p * ax)
    poly = ((((a5 * t + a4) * t + a3) * t + a2) * t + a1) * t
    return sgn * (1.0 - poly * jnp.exp(-ax * ax))


def _layernorm(x, g, b):
    mu = jnp.mean(x, axis=-1, keepdims=True)
    var = jnp.mean(jnp.square(x - mu), axis=-1, keepdims=True)
    return (x - mu) * jax.lax.rsqrt(var + EPS) * g + b


# ---------------------------- fused forward kernel ----------------------------
def _vit_fused_kernel(
    patches_ref,      # (1, S, CPP)   this image's patches; zero row at cls position
    g_ref,            # (G_ROWS, 128) packed global slab (w_patch, cls+pos, LNs, proj)
    l_ref,            # (L, L_ROWS, 128) packed per-layer slab (all block weights)
    out_ref,          # (1, 8, 128)   lane-dense padded output block
    *, seq, cpp, width, mlp, heads, head_dim, layers,
):
    # ---- static row offsets into the packed slabs (Python ints at trace time) ----
    row_cls = cpp                               # cls + positional embedding rows
    row_ln = _round_up(cpp + seq, 8)            # ln_pre_g/b, ln_post_g/b rows
    row_proj = row_ln + 8                       # 128-lane padded projection rows
    r_outw = 3 * width                          # per-layer slab regions
    r_fcw = r_outw + width
    r_cpw = r_fcw + width
    r_vec = r_cpw + mlp
    inv_sqrt2 = 1.0 / math.sqrt(2.0)

    # ---- patch-embed matmul + class/positional embedding + ln_pre ----
    x = jnp.dot(patches_ref[0], g_ref[0:cpp, 0:width],
                preferred_element_type=jnp.float32)                      # (S, W)
    x = x + g_ref[row_cls:row_cls + seq, 0:width]
    x = _layernorm(x,
                   g_ref[row_ln + 0:row_ln + 1, 0:width],
                   g_ref[row_ln + 1:row_ln + 2, 0:width])

    for l in range(layers):
        # -------- residual attention sub-block --------
        h1 = _layernorm(x,
                        l_ref[l, r_vec + 0:r_vec + 1, 0:width],
                        l_ref[l, r_vec + 1:r_vec + 2, 0:width])
        # QKV computed transposed: (3W, S).  W_q / b_q were pre-scaled by
        # 1/sqrt(head_dim) in the wrapper; the bias lives in lane `width` of the
        # same slab rows, so it is already a (3W, 1) column.
        qkv_t = (jnp.dot(l_ref[l, 0:3 * width, 0:width], h1.T,
                         preferred_element_type=jnp.float32)
                 + l_ref[l, 0:3 * width, width:width + 1])               # (3W, S)
        # Head extraction = sublane-tile split (free for f32).
        q = qkv_t[0:width].reshape(heads, head_dim, seq)                 # (H, Dh, S)
        k = qkv_t[width:2 * width].reshape(heads, head_dim, seq)
        v = qkv_t[2 * width:3 * width].reshape(heads, head_dim, seq)

        # All heads at once; softmax issued once over the (H, S, S) slab.
        s = jnp.einsum('hdi,hdj->hij', q, k,
                       preferred_element_type=jnp.float32)               # (H, S, S)
        s = s - jnp.max(s, axis=-1, keepdims=True)
        e = jnp.exp(s)
        p = e / jnp.sum(e, axis=-1, keepdims=True)                       # exact div
        o_t = jnp.einsum('hdj,hij->hdi', v, p,
                         preferred_element_type=jnp.float32)             # (H, Dh, S)
        o_t = o_t.reshape(width, seq)                                    # (W, S)
        # Single output projection for all heads: sum_w o[i,w] * W_o[w,m].
        attn = jax.lax.dot_general(
            o_t, l_ref[l, r_outw:r_outw + width, 0:width],
            (((0,), (0,)), ((), ())),
            preferred_element_type=jnp.float32)                          # (S, W)
        x = x + attn + l_ref[l, r_vec + 4:r_vec + 5, 0:width]

        # -------- residual MLP sub-block --------
        h2 = _layernorm(x,
                        l_ref[l, r_vec + 2:r_vec + 3, 0:width],
                        l_ref[l, r_vec + 3:r_vec + 4, 0:width])
        m = (jnp.dot(h2, l_ref[l, r_fcw:r_fcw + width, 0:mlp],
                     preferred_element_type=jnp.float32)
             + l_ref[l, r_vec + 6:r_vec + 7, 0:mlp])                     # (S, MLP)
        m = 0.5 * m * (1.0 + _erf_f32(m * inv_sqrt2))                    # exact GELU
        x = (x
             + jnp.dot(m, l_ref[l, r_cpw:r_cpw + mlp, 0:width],
                       preferred_element_type=jnp.float32)
             + l_ref[l, r_vec + 5:r_vec + 6, 0:width])

    # ---- tail: ln_post on the cls token + 128-lane padded projection ----
    x0 = _layernorm(x[0:1, :],
                    g_ref[row_ln + 2:row_ln + 3, 0:width],
                    g_ref[row_ln + 3:row_ln + 4, 0:width])               # (1, W)
    res = jnp.dot(x0, g_ref[row_proj:row_proj + width, :],
                  preferred_element_type=jnp.float32)                    # (1, 128)
    # Lane-dense, unmasked (8, 128) store; wrapper slices row 0 / first OUTPUT_DIM.
    out_ref[0] = jnp.broadcast_to(res, (OUT_SUBLANES, LANES))


# ---------------------------- parameters ----------------------------
def init_params(key):
    scale = WIDTH ** (-0.5)

    def nrm(k, shape, s=0.02):
        return s * jax.random.normal(k, shape, dtype=jnp.float32)

    k = jax.random.split(key, 12)
    return {
        # conv1: Conv2d(3, WIDTH, kernel_size=PATCH_SIZE, stride=PATCH_SIZE, bias=False)
        "conv1_w": nrm(k[0], (WIDTH, 3, PATCH_SIZE, PATCH_SIZE)),
        "class_embedding": scale * jax.random.normal(k[1], (WIDTH,), jnp.float32),
        "positional_embedding": scale * jax.random.normal(k[2], (SEQ, WIDTH), jnp.float32),
        "ln_pre_g": jnp.ones((WIDTH,), jnp.float32),
        "ln_pre_b": jnp.zeros((WIDTH,), jnp.float32),
        "ln_post_g": jnp.ones((WIDTH,), jnp.float32),
        "ln_post_b": jnp.zeros((WIDTH,), jnp.float32),
        "proj": scale * jax.random.normal(k[3], (WIDTH, OUTPUT_DIM), jnp.float32),
        # per-layer weights stacked on a leading LAYERS axis; linear weights stored
        # as (in, out) — already transposed vs torch's (out, in)
        "ln1_g": jnp.ones((LAYERS, WIDTH), jnp.float32),
        "ln1_b": jnp.zeros((LAYERS, WIDTH), jnp.float32),
        "ln2_g": jnp.ones((LAYERS, WIDTH), jnp.float32),
        "ln2_b": jnp.zeros((LAYERS, WIDTH), jnp.float32),
        "in_proj_w": nrm(k[4], (LAYERS, WIDTH, 3 * WIDTH)),
        "in_proj_b": nrm(k[5], (LAYERS, 3 * WIDTH)),
        "out_proj_w": nrm(k[6], (LAYERS, WIDTH, WIDTH)),
        "out_proj_b": nrm(k[7], (LAYERS, WIDTH)),
        "fc_w": nrm(k[8], (LAYERS, WIDTH, MLP_WIDTH)),
        "fc_b": nrm(k[9], (LAYERS, MLP_WIDTH)),
        "cproj_w": nrm(k[10], (LAYERS, MLP_WIDTH, WIDTH)),
        "cproj_b": nrm(k[11], (LAYERS, WIDTH)),
    }


# ---------------------------- weight packing (wrapper-side, one-time) ----------------------------
def _pack_global_slab(params, cpp, seq):
    """One (G_ROWS, 128) f32 slab: patch-embed weight, cls+pos embedding,
    ln_pre / ln_post vectors, and the output projection padded to 128 lanes."""
    w = WIDTH
    row_cls = cpp
    row_ln = _round_up(cpp + seq, 8)
    row_proj = row_ln + 8
    g_rows = row_proj + w
    g = jnp.zeros((g_rows, LANES), jnp.float32)

    w_patch = params["conv1_w"].reshape(w, cpp).T                        # (CPP, W)
    g = g.at[0:cpp, :w].set(w_patch)
    clspos = params["positional_embedding"].at[0].add(params["class_embedding"])
    g = g.at[row_cls:row_cls + seq, :w].set(clspos)
    g = g.at[row_ln + 0, :w].set(params["ln_pre_g"])
    g = g.at[row_ln + 1, :w].set(params["ln_pre_b"])
    g = g.at[row_ln + 2, :w].set(params["ln_post_g"])
    g = g.at[row_ln + 3, :w].set(params["ln_post_b"])
    g = g.at[row_proj:row_proj + w, :OUTPUT_DIM].set(params["proj"])     # lane-padded
    return g


def _pack_layer_slab(params):
    """One (LAYERS, L_ROWS, 128) f32 slab holding every transformer-block weight:
       rows [0, 3W):     in_proj weight transposed (3W, W), q-part pre-scaled;
                         in_proj bias stored as a column at lane W.
       rows [3W, 4W):    out_proj weight (W, W)
       rows [4W, 5W):    mlp c_fc weight (W, MLP)
       rows [5W, 5W+MLP):mlp c_proj weight (MLP, W)
       next 8 rows:      ln1_g, ln1_b, ln2_g, ln2_b, out_b, cp_b, fc_b, (pad)."""
    w, mw, nl = WIDTH, MLP_WIDTH, LAYERS
    r_outw = 3 * w
    r_fcw = r_outw + w
    r_cpw = r_fcw + w
    r_vec = r_cpw + mw
    rows = _round_up(r_vec + 8, 8)
    s = jnp.zeros((nl, rows, LANES), jnp.float32)

    # fold 1/sqrt(head_dim) into W_q and b_q (review item #3)
    scale = HEAD_DIM ** (-0.5)
    qscale = jnp.concatenate(
        [jnp.full((w,), scale, jnp.float32), jnp.ones((2 * w,), jnp.float32)])
    in_wT = jnp.swapaxes(params["in_proj_w"], 1, 2) * qscale[None, :, None]  # (L,3W,W)
    in_b = params["in_proj_b"] * qscale[None, :]                              # (L,3W)

    s = s.at[:, 0:3 * w, :w].set(in_wT)
    s = s.at[:, 0:3 * w, w].set(in_b)                     # bias as a (3W,1) column
    s = s.at[:, r_outw:r_outw + w, :w].set(params["out_proj_w"])
    s = s.at[:, r_fcw:r_fcw + w, :mw].set(params["fc_w"])
    s = s.at[:, r_cpw:r_cpw + mw, :w].set(params["cproj_w"])
    s = s.at[:, r_vec + 0, :w].set(params["ln1_g"])
    s = s.at[:, r_vec + 1, :w].set(params["ln1_b"])
    s = s.at[:, r_vec + 2, :w].set(params["ln2_g"])
    s = s.at[:, r_vec + 3, :w].set(params["ln2_b"])
    s = s.at[:, r_vec + 4, :w].set(params["out_proj_b"])
    s = s.at[:, r_vec + 5, :w].set(params["cproj_b"])
    s = s.at[:, r_vec + 6, :mw].set(params["fc_b"])
    return s


# ---------------------------- forward pass ----------------------------
def visual_transformer_forward(params, x_nchw):
    b, c, hh, ww = x_nchw.shape
    ps = PATCH_SIZE
    gh, gw = hh // ps, ww // ps
    seq = gh * gw + 1
    cpp = c * ps * ps

    if seq != params["positional_embedding"].shape[0]:
        # TODO(synk): bicubic interpolation of positional embeddings for mismatched
        # token counts (F.interpolate mode='bicubic') not implemented.
        raise NotImplementedError("positional-embedding interpolation not implemented")

    # conv1 with kernel == stride == patch_size  ==  patchify + matmul.
    # Patch vector ordering (cin, ky, kx) matches the torch conv-weight flatten order.
    patches = (
        x_nchw.reshape(b, c, gh, ps, gw, ps)
        .transpose(0, 2, 4, 1, 3, 5)
        .reshape(b, gh * gw, cpp)
        .astype(jnp.float32)
    )
    # zero "patch" at the cls position; the cls/pos slab supplies the cls value.
    patches = jnp.concatenate([jnp.zeros((b, 1, cpp), jnp.float32), patches], axis=1)

    gslab = _pack_global_slab(params, cpp, seq)          # (G_ROWS, 128)
    lslab = _pack_layer_slab(params)                     # (L, L_ROWS, 128)

    kernel = partial(
        _vit_fused_kernel,
        seq=seq, cpp=cpp, width=WIDTH, mlp=MLP_WIDTH,
        heads=HEADS, head_dim=HEAD_DIM, layers=LAYERS,
    )

    out = pl.pallas_call(
        kernel,
        out_shape=jax.ShapeDtypeStruct((b, OUT_SUBLANES, LANES), jnp.float32),
        grid=(b,),
        in_specs=[
            pl.BlockSpec((1, seq, cpp), lambda i: (i, 0, 0)),            # per-image
            pl.BlockSpec(gslab.shape, lambda i: (0, 0)),                 # resident
            pl.BlockSpec(lslab.shape, lambda i: (0, 0, 0)),              # resident
        ],
        out_specs=pl.BlockSpec((1, OUT_SUBLANES, LANES), lambda i: (i, 0, 0)),
        compiler_params=pltpu.CompilerParams(
            dimension_semantics=("parallel",)),                          # v7x 2nd TC
    )(patches, gslab, lslab)

    # un-pad the lane-dense output
    return out[:, 0, :OUTPUT_DIM]


# ---------------------------- driver ----------------------------
if __name__ == "__main__":
    key = jax.random.PRNGKey(0)
    pkey, xkey = jax.random.split(key)
    params = init_params(pkey)
    x = jax.random.normal(xkey, (BATCH, 3, IMAGE_SIZE, IMAGE_SIZE), dtype=jnp.float32)

    out = jax.jit(visual_transformer_forward)(params, x)
    out = jax.block_until_ready(out)

    assert out.shape == (BATCH, OUTPUT_DIM), out.shape
    assert out.dtype == jnp.float32
    assert bool(jnp.all(jnp.isfinite(out)))
    print("KERNEL_OK")
</pallas_src>

<mosaic_0001>
module attributes {stable_mosaic.version = 11 : i64} {
  func.func @_vit_fused_kernel(%arg0: i32, %arg1: memref<1x5x192xf32, #tpu.memory_space<vmem>>, %arg2: memref<240x128xf32, #tpu.memory_space<vmem>>, %arg3: memref<2x296x128xf32, #tpu.memory_space<vmem>>, %arg4: memref<1x8x128xf32, #tpu.memory_space<vmem>>) attributes {dimension_semantics = [#tpu.dimension_semantics<parallel>], iteration_bounds = array<i64: 2>, scalar_prefetch = 0 : i64, scratch_operands = 0 : i64, tpu.core_type = #tpu.core_type<tc>, window_params = [{transform_indices = @transform_0, window_bounds = array<i64: 1, 5, 192>}, {pipeline_mode = #tpu.pipeline_mode<synchronous>, transform_indices = @transform_1, window_bounds = array<i64: 240, 128>}, {pipeline_mode = #tpu.pipeline_mode<synchronous>, transform_indices = @transform_2, window_bounds = array<i64: 2, 296, 128>}, {transform_indices = @transform_3, window_bounds = array<i64: 1, 8, 128>}]} {
    %c0 = arith.constant 0 : index
    %c0_0 = arith.constant 0 : index
    %c0_1 = arith.constant 0 : index
    %0 = vector.load %arg1[%c0, %c0_0, %c0_1] : memref<1x5x192xf32, #tpu.memory_space<vmem>>, vector<1x5x192xf32>
    %1 = vector.shape_cast %0 : vector<1x5x192xf32> to vector<5x192xf32>
    %c0_2 = arith.constant 0 : index
    %c0_3 = arith.constant 0 : index
    %2 = vector.load %arg2[%c0_2, %c0_3] : memref<240x128xf32, #tpu.memory_space<vmem>>, vector<192x32xf32>
    %cst = arith.constant dense<0.000000e+00> : vector<5x32xf32>
    %3 = tpu.matmul %1, %2, %cst {dimension_numbers = #tpu.dot_dimension_numbers<[1], [0], [0], [1], [0, 0, 1, 1], [], []>} : vector<5x192xf32>, vector<192x32xf32>, vector<5x32xf32> -> vector<5x32xf32>
    %c192 = arith.constant 192 : index
    %c0_4 = arith.constant 0 : index
    %4 = vector.load %arg2[%c192, %c0_4] : memref<240x128xf32, #tpu.memory_space<vmem>>, vector<5x32xf32>
    %5 = arith.addf %3, %4 : vector<5x32xf32>
    %c200 = arith.constant 200 : index
    %c0_5 = arith.constant 0 : index
    %6 = vector.load %arg2[%c200, %c0_5] : memref<240x128xf32, #tpu.memory_space<vmem>>, vector<1x32xf32>
    %c201 = arith.constant 201 : index
    %c0_6 = arith.constant 0 : index
    %7 = vector.load %arg2[%c201, %c0_6] : memref<240x128xf32, #tpu.memory_space<vmem>>, vector<1x32xf32>
    %cst_7 = arith.constant dense<0.000000e+00> : vector<5xf32>
    %8 = vector.multi_reduction <add>, %5, %cst_7 [1] : vector<5x32xf32> to vector<5xf32>
    %9 = vector.shape_cast %8 : vector<5xf32> to vector<5x1xf32>
    %cst_8 = arith.constant 3.200000e+01 : f32
    %10 = vector.broadcast %cst_8 : f32 to vector<5x1xf32>
    %11 = arith.divf %9, %10 : vector<5x1xf32>
    %12 = vector.broadcast %11 : vector<5x1xf32> to vector<5x32xf32>
    %13 = arith.subf %5, %12 : vector<5x32xf32>
    %14 = arith.mulf %13, %13 : vector<5x32xf32>
    %cst_9 = arith.constant dense<0.000000e+00> : vector<5xf32>
    %15 = vector.multi_reduction <add>, %14, %cst_9 [1] : vector<5x32xf32> to vector<5xf32>
    %16 = vector.shape_cast %15 : vector<5xf32> to vector<5x1xf32>
    %cst_10 = arith.constant 3.200000e+01 : f32
    %17 = vector.broadcast %cst_10 : f32 to vector<5x1xf32>
    %18 = arith.divf %16, %17 : vector<5x1xf32>
    %19 = vector.broadcast %11 : vector<5x1xf32> to vector<5x32xf32>
    %20 = arith.subf %5, %19 : vector<5x32xf32>
    %cst_11 = arith.constant 9.99999974E-6 : f32
    %21 = vector.broadcast %cst_11 : f32 to vector<5x1xf32>
    %22 = arith.addf %18, %21 : vector<5x1xf32>
    %23 = math.rsqrt %22 : vector<5x1xf32>
    %24 = vector.broadcast %23 : vector<5x1xf32> to vector<5x32xf32>
    %25 = arith.mulf %20, %24 : vector<5x32xf32>
    %26 = vector.broadcast %6 : vector<1x32xf32> to vector<5x32xf32>
    %27 = arith.mulf %25, %26 : vector<5x32xf32>
    %28 = vector.broadcast %7 : vector<1x32xf32> to vector<5x32xf32>
    %29 = arith.addf %27, %28 : vector<5x32xf32>
    %c0_12 = arith.constant 0 : index
    %c288 = arith.constant 288 : index
    %c0_13 = arith.constant 0 : index
    %30 = vector.load %arg3[%c0_12, %c288, %c0_13] : memref<2x296x128xf32, #tpu.memory_space<vmem>>, vector<1x1x32xf32>
    %31 = vector.shape_cast %30 : vector<1x1x32xf32> to vector<1x32xf32>
    %c0_14 = arith.constant 0 : index
    %c289 = arith.constant 289 : index
    %c0_15 = arith.constant 0 : index
    %32 = vector.load %arg3[%c0_14, %c289, %c0_15] : memref<2x296x128xf32, #tpu.memory_space<vmem>>, vector<1x1x32xf32>
    %33 = vector.shape_cast %32 : vector<1x1x32xf32> to vector<1x32xf32>
    %cst_16 = arith.constant dense<0.000000e+00> : vector<5xf32>
    %34 = vector.multi_reduction <add>, %29, %cst_16 [1] : vector<5x32xf32> to vector<5xf32>
    %35 = vector.shape_cast %34 : vector<5xf32> to vector<5x1xf32>
    %cst_17 = arith.constant 3.200000e+01 : f32
    %36 = vector.broadcast %cst_17 : f32 to vector<5x1xf32>
    %37 = arith.divf %35, %36 : vector<5x1xf32>
    %38 = vector.broadcast %37 : vector<5x1xf32> to vector<5x32xf32>
    %39 = arith.subf %29, %38 : vector<5x32xf32>
    %40 = arith.mulf %39, %39 : vector<5x32xf32>
    %cst_18 = arith.constant dense<0.000000e+00> : vector<5xf32>
    %41 = vector.multi_reduction <add>, %40, %cst_18 [1] : vector<5x32xf32> to vector<5xf32>
    %42 = vector.shape_cast %41 : vector<5xf32> to vector<5x1xf32>
    %cst_19 = arith.constant 3.200000e+01 : f32
    %43 = vector.broadcast %cst_19 : f32 to vector<5x1xf32>
    %44 = arith.divf %42, %43 : vector<5x1xf32>
    %45 = vector.broadcast %37 : vector<5x1xf32> to vector<5x32xf32>
    %46 = arith.subf %29, %45 : vector<5x32xf32>
    %cst_20 = arith.constant 9.99999974E-6 : f32
    %47 = vector.broadcast %cst_20 : f32 to vector<5x1xf32>
    %48 = arith.addf %44, %47 : vector<5x1xf32>
    %49 = math.rsqrt %48 : vector<5x1xf32>
    %50 = vector.broadcast %49 : vector<5x1xf32> to vector<5x32xf32>
    %51 = arith.mulf %46, %50 : vector<5x32xf32>
    %52 = vector.broadcast %31 : vector<1x32xf32> to vector<5x32xf32>
    %53 = arith.mulf %51, %52 : vector<5x32xf32>
    %54 = vector.broadcast %33 : vector<1x32xf32> to vector<5x32xf32>
    %55 = arith.addf %53, %54 : vector<5x32xf32>
    %c0_21 = arith.constant 0 : index
    %c0_22 = arith.constant 0 : index
    %c0_23 = arith.constant 0 : index
    %56 = vector.load %arg3[%c0_21, %c0_22, %c0_23] : memref<2x296x128xf32, #tpu.memory_space<vmem>>, vector<1x96x32xf32>
    %57 = vector.shape_cast %56 : vector<1x96x32xf32> to vector<96x32xf32>
    %58 = tpu.transpose %55, [1, 0] : vector<5x32xf32> -> vector<32x5xf32>
    %cst_24 = arith.constant dense<0.000000e+00> : vector<96x5xf32>
    %59 = tpu.matmul %57, %58, %cst_24 {dimension_numbers = #tpu.dot_dimension_numbers<[1], [0], [0], [1], [0, 0, 1, 1], [], []>} : vector<96x32xf32>, vector<32x5xf32>, vector<96x5xf32> -> vector<96x5xf32>
    %c0_25 = arith.constant 0 : index
    %c0_26 = arith.constant 0 : index
    %c32 = arith.constant 32 : index
    %60 = vector.load %arg3[%c0_25, %c0_26, %c32] : memref<2x296x128xf32, #tpu.memory_space<vmem>>, vector<1x96x1xf32>
    %61 = vector.shape_cast %60 : vector<1x96x1xf32> to vector<96x1xf32>
    %62 = vector.broadcast %61 : vector<96x1xf32> to vector<96x5xf32>
    %63 = arith.addf %59, %62 : vector<96x5xf32>
    %64 = vector.extract_strided_slice %63 {offsets = [0, 0], sizes = [32, 5], strides = [1, 1]} : vector<96x5xf32> to vector<32x5xf32>
    %65 = vector.shape_cast %64 : vector<32x5xf32> to vector<4x8x5xf32>
    %66 = vector.extract_strided_slice %63 {offsets = [32, 0], sizes = [32, 5], strides = [1, 1]} : vector<96x5xf32> to vector<32x5xf32>
    %67 = vector.shape_cast %66 : vector<32x5xf32> to vector<4x8x5xf32>
    %68 = vector.extract_strided_slice %63 {offsets = [64, 0], sizes = [32, 5], strides = [1, 1]} : vector<96x5xf32> to vector<32x5xf32>
    %69 = vector.shape_cast %68 : vector<32x5xf32> to vector<4x8x5xf32>
    "tpu.trace_start"() <{level = 10 : i32, message = "hdi,hdj->hij"}> : () -> ()
    %cst_27 = arith.constant dense<0.000000e+00> : vector<4x5x5xf32>
    %70 = tpu.matmul %65, %67, %cst_27 {dimension_numbers = #tpu.dot_dimension_numbers<[1], [1], [2], [2], [0, 0, 0, 2, 1, 2], [0], [0]>} : vector<4x8x5xf32>, vector<4x8x5xf32>, vector<4x5x5xf32> -> vector<4x5x5xf32>
    "tpu.trace_stop"() : () -> ()
    %cst_28 = arith.constant dense<0xFF800000> : vector<4x5xf32>
    %71 = vector.multi_reduction <maximumf>, %70, %cst_28 [2] : vector<4x5x5xf32> to vector<4x5xf32>
    %72 = vector.shape_cast %71 : vector<4x5xf32> to vector<4x5x1xf32>
    %73 = vector.broadcast %72 : vector<4x5x1xf32> to vector<4x5x5xf32>
    %74 = arith.subf %70, %73 : vector<4x5x5xf32>
    %75 = math.exp %74 : vector<4x5x5xf32>
    %cst_29 = arith.constant dense<0.000000e+00> : vector<4x5xf32>
    %76 = vector.multi_reduction <add>, %75, %cst_29 [2] : vector<4x5x5xf32> to vector<4x5xf32>
    %77 = vector.shape_cast %76 : vector<4x5xf32> to vector<4x5x1xf32>
    %78 = vector.broadcast %77 : vector<4x5x1xf32> to vector<4x5x5xf32>
    %79 = arith.divf %75, %78 : vector<4x5x5xf32>
    "tpu.trace_start"() <{level = 10 : i32, message = "hdj,hij->hdi"}> : () -> ()
    %cst_30 = arith.constant dense<0.000000e+00> : vector<4x8x5xf32>
    %80 = tpu.matmul %69, %79, %cst_30 {dimension_numbers = #tpu.dot_dimension_numbers<[2], [2], [1], [1], [0, 0, 0, 1, 1, 1], [0], [0]>} : vector<4x8x5xf32>, vector<4x5x5xf32>, vector<4x8x5xf32> -> vector<4x8x5xf32>
    "tpu.trace_stop"() : () -> ()
    %81 = vector.shape_cast %80 : vector<4x8x5xf32> to vector<32x5xf32>
    %c0_31 = arith.constant 0 : index
    %c96 = arith.constant 96 : index
    %c0_32 = arith.constant 0 : index
    %82 = vector.load %arg3[%c0_31, %c96, %c0_32] : memref<2x296x128xf32, #tpu.memory_space<vmem>>, vector<1x32x32xf32>
    %83 = vector.shape_cast %82 : vector<1x32x32xf32> to vector<32x32xf32>
    %cst_33 = arith.constant dense<0.000000e+00> : vector<5x32xf32>
    %84 = tpu.matmul %81, %83, %cst_33 {dimension_numbers = #tpu.dot_dimension_numbers<[0], [0], [1], [1], [0, 1, 1, 1], [], []>} : vector<32x5xf32>, vector<32x32xf32>, vector<5x32xf32> -> vector<5x32xf32>
    %85 = arith.addf %29, %84 : vector<5x32xf32>
    %c0_34 = arith.constant 0 : index
    %c292 = arith.constant 292 : index
    %c0_35 = arith.constant 0 : index
    %86 = vector.load %arg3[%c0_34, %c292, %c0_35] : memref<2x296x128xf32, #tpu.memory_space<vmem>>, vector<1x1x32xf32>
    %87 = vector.shape_cast %86 : vector<1x1x32xf32> to vector<1x32xf32>
    %88 = vector.broadcast %87 : vector<1x32xf32> to vector<5x32xf32>
    %89 = arith.addf %85, %88 : vector<5x32xf32>
    %c0_36 = arith.constant 0 : index
    %c290 = arith.constant 290 : index
    %c0_37 = arith.constant 0 : index
    %90 = vector.load %arg3[%c0_36, %c290, %c0_37] : memref<2x296x128xf32, #tpu.memory_space<vmem>>, vector<1x1x32xf32>
    %91 = vector.shape_cast %90 : vector<1x1x32xf32> to vector<1x32xf32>
    %c0_38 = arith.constant 0 : index
    %c291 = arith.constant 291 : index
    %c0_39 = arith.constant 0 : index
    %92 = vector.load %arg3[%c0_38, %c291, %c0_39] : memref<2x296x128xf32, #tpu.memory_space<vmem>>, vector<1x1x32xf32>
    %93 = vector.shape_cast %92 : vector<1x1x32xf32> to vector<1x32xf32>
    %cst_40 = arith.constant dense<0.000000e+00> : vector<5xf32>
    %94 = vector.multi_reduction <add>, %89, %cst_40 [1] : vector<5x32xf32> to vector<5xf32>
    %95 = vector.shape_cast %94 : vector<5xf32> to vector<5x1xf32>
    %cst_41 = arith.constant 3.200000e+01 : f32
    %96 = vector.broadcast %cst_41 : f32 to vector<5x1xf32>
    %97 = arith.divf %95, %96 : vector<5x1xf32>
    %98 = vector.broadcast %97 : vector<5x1xf32> to vector<5x32xf32>
    %99 = arith.subf %89, %98 : vector<5x32xf32>
    %100 = arith.mulf %99, %99 : vector<5x32xf32>
    %cst_42 = arith.constant dense<0.000000e+00> : vector<5xf32>
    %101 = vector.multi_reduction <add>, %100, %cst_42 [1] : vector<5x32xf32> to vector<5xf32>
    %102 = vector.shape_cast %101 : vector<5xf32> to vector<5x1xf32>
    %cst_43 = arith.constant 3.200000e+01 : f32
    %103 = vector.broadcast %cst_43 : f32 to vector<5x1xf32>
    %104 = arith.divf %102, %103 : vector<5x1xf32>
    %105 = vector.broadcast %97 : vector<5x1xf32> to vector<5x32xf32>
    %106 = arith.subf %89, %105 : vector<5x32xf32>
    %cst_44 = arith.constant 9.99999974E-6 : f32
    %107 = vector.broadcast %cst_44 : f32 to vector<5x1xf32>
    %108 = arith.addf %104, %107 : vector<5x1xf32>
    %109 = math.rsqrt %108 : vector<5x1xf32>
    %110 = vector.broadcast %109 : vector<5x1xf32> to vector<5x32xf32>
    %111 = arith.mulf %106, %110 : vector<5x32xf32>
    %112 = vector.broadcast %91 : vector<1x32xf32> to vector<5x32xf32>
    %113 = arith.mulf %111, %112 : vector<5x32xf32>
    %114 = vector.broadcast %93 : vector<1x32xf32> to vector<5x32xf32>
    %115 = arith.addf %113, %114 : vector<5x32xf32>
    %c0_45 = arith.constant 0 : index
    %c128 = arith.constant 128 : index
    %c0_46 = arith.constant 0 : index
    %116 = vector.load %arg3[%c0_45, %c128, %c0_46] : memref<2x296x128xf32, #tpu.memory_space<vmem>>, vector<1x32x128xf32>
    %117 = vector.shape_cast %116 : vector<1x32x128xf32> to vector<32x128xf32>
    %cst_47 = arith.constant dense<0.000000e+00> : vector<5x128xf32>
    %118 = tpu.matmul %115, %117, %cst_47 {dimension_numbers = #tpu.dot_dimension_numbers<[1], [0], [0], [1], [0, 0, 1, 1], [], []>} : vector<5x32xf32>, vector<32x128xf32>, vector<5x128xf32> -> vector<5x128xf32>
    %c0_48 = arith.constant 0 : index
    %c294 = arith.constant 294 : index
    %c0_49 = arith.constant 0 : index
    %119 = vector.load %arg3[%c0_48, %c294, %c0_49] : memref<2x296x128xf32, #tpu.memory_space<vmem>>, vector<1x1x128xf32>
    %120 = vector.shape_cast %119 : vector<1x1x128xf32> to vector<1x128xf32>
    %121 = vector.broadcast %120 : vector<1x128xf32> to vector<5x128xf32>
    %122 = arith.addf %118, %121 : vector<5x128xf32>
    %cst_50 = arith.constant 5.000000e-01 : f32
    %123 = vector.broadcast %cst_50 : f32 to vector<5x128xf32>
    %124 = arith.mulf %123, %122 : vector<5x128xf32>
    %cst_51 = arith.constant 0.707106769 : f32
    %125 = vector.broadcast %cst_51 : f32 to vector<5x128xf32>
    %126 = arith.mulf %122, %125 : vector<5x128xf32>
    %cst_52 = arith.constant 0.000000e+00 : f32
    %127 = vector.broadcast %cst_52 : f32 to vector<5x128xf32>
    %128 = arith.cmpf oge, %126, %127 : vector<5x128xf32>
    %cst_53 = arith.constant 1.000000e+00 : f32
    %cst_54 = arith.constant -1.000000e+00 : f32
    %129 = vector.broadcast %cst_53 : f32 to vector<5x128xf32>
    %130 = vector.broadcast %cst_54 : f32 to vector<5x128xf32>
    %131 = arith.select %128, %129, %130 : vector<5x128xi1>, vector<5x128xf32>
    %132 = math.absf %126 : vector<5x128xf32>
    %cst_55 = arith.constant 0.327591091 : f32
    %133 = vector.broadcast %cst_55 : f32 to vector<5x128xf32>
    %134 = arith.mulf %133, %132 : vector<5x128xf32>
    %cst_56 = arith.constant 1.000000e+00 : f32
    %135 = vector.broadcast %cst_56 : f32 to vector<5x128xf32>
    %136 = arith.addf %135, %134 : vector<5x128xf32>
    %cst_57 = arith.constant 1.000000e+00 : f32
    %137 = vector.broadcast %cst_57 : f32 to vector<5x128xf32>
    %138 = arith.divf %137, %136 : vector<5x128xf32>
    %cst_58 = arith.constant 1.06140542 : f32
    %139 = vector.broadcast %cst_58 : f32 to vector<5x128xf32>
    %140 = arith.mulf %139, %138 : vector<5x128xf32>
    %cst_59 = arith.constant -1.45315206 : f32
    %141 = vector.broadcast %cst_59 : f32 to vector<5x128xf32>
    %142 = arith.addf %140, %141 : vector<5x128xf32>
    %143 = arith.mulf %142, %138 : vector<5x128xf32>
    %cst_60 = arith.constant 1.42141378 : f32
    %144 = vector.broadcast %cst_60 : f32 to vector<5x128xf32>
    %145 = arith.addf %143, %144 : vector<5x128xf32>
    %146 = arith.mulf %145, %138 : vector<5x128xf32>
    %cst_61 = arith.constant -0.284496725 : f32
    %147 = vector.broadcast %cst_61 : f32 to vector<5x128xf32>
    %148 = arith.addf %146, %147 : vector<5x128xf32>
    %149 = arith.mulf %148, %138 : vector<5x128xf32>
    %cst_62 = arith.constant 0.254829586 : f32
    %150 = vector.broadcast %cst_62 : f32 to vector<5x128xf32>
    %151 = arith.addf %149, %150 : vector<5x128xf32>
    %152 = arith.mulf %151, %138 : vector<5x128xf32>
    %cst_63 = arith.constant 0.000000e+00 : f32
    %153 = vector.broadcast %cst_63 : f32 to vector<5x128xf32>
    %154 = arith.subf %153, %132 : vector<5x128xf32>
    %155 = arith.mulf %154, %132 : vector<5x128xf32>
    %156 = math.exp %155 : vector<5x128xf32>
    %157 = arith.mulf %152, %156 : vector<5x128xf32>
    %cst_64 = arith.constant 1.000000e+00 : f32
    %158 = vector.broadcast %cst_64 : f32 to vector<5x128xf32>
    %159 = arith.subf %158, %157 : vector<5x128xf32>
    %160 = arith.mulf %131, %159 : vector<5x128xf32>
    %cst_65 = arith.constant 1.000000e+00 : f32
    %161 = vector.broadcast %cst_65 : f32 to vector<5x128xf32>
    %162 = arith.addf %161, %160 : vector<5x128xf32>
    %163 = arith.mulf %124, %162 : vector<5x128xf32>
    %c0_66 = arith.constant 0 : index
    %c160 = arith.constant 160 : index
    %c0_67 = arith.constant 0 : index
    %164 = vector.load %arg3[%c0_66, %c160, %c0_67] : memref<2x296x128xf32, #tpu.memory_space<vmem>>, vector<1x128x32xf32>
    %165 = vector.shape_cast %164 : vector<1x128x32xf32> to vector<128x32xf32>
    %cst_68 = arith.constant dense<0.000000e+00> : vector<5x32xf32>
    %166 = tpu.matmul %163, %165, %cst_68 {dimension_numbers = #tpu.dot_dimension_numbers<[1], [0], [0], [1], [0, 0, 1, 1], [], []>} : vector<5x128xf32>, vector<128x32xf32>, vector<5x32xf32> -> vector<5x32xf32>
    %167 = arith.addf %89, %166 : vector<5x32xf32>
    %c0_69 = arith.constant 0 : index
    %c293 = arith.constant 293 : index
    %c0_70 = arith.constant 0 : index
    %168 = vector.load %arg3[%c0_69, %c293, %c0_70] : memref<2x296x128xf32, #tpu.memory_space<vmem>>, vector<1x1x32xf32>
    %169 = vector.shape_cast %168 : vector<1x1x32xf32> to vector<1x32xf32>
    %170 = vector.broadcast %169 : vector<1x32xf32> to vector<5x32xf32>
    %171 = arith.addf %167, %170 : vector<5x32xf32>
    %c1 = arith.constant 1 : index
    %c288_71 = arith.constant 288 : index
    %c0_72 = arith.constant 0 : index
    %172 = vector.load %arg3[%c1, %c288_71, %c0_72] : memref<2x296x128xf32, #tpu.memory_space<vmem>>, vector<1x1x32xf32>
    %173 = vector.shape_cast %172 : vector<1x1x32xf32> to vector<1x32xf32>
    %c1_73 = arith.constant 1 : index
    %c289_74 = arith.constant 289 : index
    %c0_75 = arith.constant 0 : index
    %174 = vector.load %arg3[%c1_73, %c289_74, %c0_75] : memref<2x296x128xf32, #tpu.memory_space<vmem>>, vector<1x1x32xf32>
    %175 = vector.shape_cast %174 : vector<1x1x32xf32> to vector<1x32xf32>
    %cst_76 = arith.constant dense<0.000000e+00> : vector<5xf32>
    %176 = vector.multi_reduction <add>, %171, %cst_76 [1] : vector<5x32xf32> to vector<5xf32>
    %177 = vector.shape_cast %176 : vector<5xf32> to vector<5x1xf32>
    %cst_77 = arith.constant 3.200000e+01 : f32
    %178 = vector.broadcast %cst_77 : f32 to vector<5x1xf32>
    %179 = arith.divf %177, %178 : vector<5x1xf32>
    %180 = vector.broadcast %179 : vector<5x1xf32> to vector<5x32xf32>
    %181 = arith.subf %171, %180 : vector<5x32xf32>
    %182 = arith.mulf %181, %181 : vector<5x32xf32>
    %cst_78 = arith.constant dense<0.000000e+00> : vector<5xf32>
    %183 = vector.multi_reduction <add>, %182, %cst_78 [1] : vector<5x32xf32> to vector<5xf32>
    %184 = vector.shape_cast %183 : vector<5xf32> to vector<5x1xf32>
    %cst_79 = arith.constant 3.200000e+01 : f32
    %185 = vector.broadcast %cst_79 : f32 to vector<5x1xf32>
    %186 = arith.divf %184, %185 : vector<5x1xf32>
    %187 = vector.broadcast %179 : vector<5x1xf32> to vector<5x32xf32>
    %188 = arith.subf %171, %187 : vector<5x32xf32>
    %cst_80 = arith.constant 9.99999974E-6 : f32
    %189 = vector.broadcast %cst_80 : f32 to vector<5x1xf32>
    %190 = arith.addf %186, %189 : vector<5x1xf32>
    %191 = math.rsqrt %190 : vector<5x1xf32>
    %192 = vector.broadcast %191 : vector<5x1xf32> to vector<5x32xf32>
    %193 = arith.mulf %188, %192 : vector<5x32xf32>
    %194 = vector.broadcast %173 : vector<1x32xf32> to vector<5x32xf32>
    %195 = arith.mulf %193, %194 : vector<5x32xf32>
    %196 = vector.broadcast %175 : vector<1x32xf32> to vector<5x32xf32>
    %197 = arith.addf %195, %196 : vector<5x32xf32>
    %c1_81 = arith.constant 1 : index
    %c0_82 = arith.constant 0 : index
    %c0_83 = arith.constant 0 : index
    %198 = vector.load %arg3[%c1_81, %c0_82, %c0_83] : memref<2x296x128xf32, #tpu.memory_space<vmem>>, vector<1x96x32xf32>
    %199 = vector.shape_cast %198 : vector<1x96x32xf32> to vector<96x32xf32>
    %200 = tpu.transpose %197, [1, 0] : vector<5x32xf32> -> vector<32x5xf32>
    %cst_84 = arith.constant dense<0.000000e+00> : vector<96x5xf32>
    %201 = tpu.matmul %199, %200, %cst_84 {dimension_numbers = #tpu.dot_dimension_numbers<[1], [0], [0], [1], [0, 0, 1, 1], [], []>} : vector<96x32xf32>, vector<32x5xf32>, vector<96x5xf32> -> vector<96x5xf32>
    %c1_85 = arith.constant 1 : index
    %c0_86 = arith.constant 0 : index
    %c32_87 = arith.constant 32 : index
    %202 = vector.load %arg3[%c1_85, %c0_86, %c32_87] : memref<2x296x128xf32, #tpu.memory_space<vmem>>, vector<1x96x1xf32>
    %203 = vector.shape_cast %202 : vector<1x96x1xf32> to vector<96x1xf32>
    %204 = vector.broadcast %203 : vector<96x1xf32> to vector<96x5xf32>
    %205 = arith.addf %201, %204 : vector<96x5xf32>
    %206 = vector.extract_strided_slice %205 {offsets = [0, 0], sizes = [32, 5], strides = [1, 1]} : vector<96x5xf32> to vector<32x5xf32>
    %207 = vector.shape_cast %206 : vector<32x5xf32> to vector<4x8x5xf32>
    %208 = vector.extract_strided_slice %205 {offsets = [32, 0], sizes = [32, 5], strides = [1, 1]} : vector<96x5xf32> to vector<32x5xf32>
    %209 = vector.shape_cast %208 : vector<32x5xf32> to vector<4x8x5xf32>
    %210 = vector.extract_strided_slice %205 {offsets = [64, 0], sizes = [32, 5], strides = [1, 1]} : vector<96x5xf32> to vector<32x5xf32>
    %211 = vector.shape_cast %210 : vector<32x5xf32> to vector<4x8x5xf32>
    "tpu.trace_start"() <{level = 10 : i32, message = "hdi,hdj->hij"}> : () -> ()
    %cst_88 = arith.constant dense<0.000000e+00> : vector<4x5x5xf32>
    %212 = tpu.matmul %207, %209, %cst_88 {dimension_numbers = #tpu.dot_dimension_numbers<[1], [1], [2], [2], [0, 0, 0, 2, 1, 2], [0], [0]>} : vector<4x8x5xf32>, vector<4x8x5xf32>, vector<4x5x5xf32> -> vector<4x5x5xf32>
    "tpu.trace_stop"() : () -> ()
    %cst_89 = arith.constant dense<0xFF800000> : vector<4x5xf32>
    %213 = vector.multi_reduction <maximumf>, %212, %cst_89 [2] : vector<4x5x5xf32> to vector<4x5xf32>
    %214 = vector.shape_cast %213 : vector<4x5xf32> to vector<4x5x1xf32>
    %215 = vector.broadcast %214 : vector<4x5x1xf32> to vector<4x5x5xf32>
    %216 = arith.subf %212, %215 : vector<4x5x5xf32>
    %217 = math.exp %216 : vector<4x5x5xf32>
    %cst_90 = arith.constant dense<0.000000e+00> : vector<4x5xf32>
    %218 = vector.multi_reduction <add>, %217, %cst_90 [2] : vector<4x5x5xf32> to vector<4x5xf32>
    %219 = vector.shape_cast %218 : vector<4x5xf32> to vector<4x5x1xf32>
    %220 = vector.broadcast %219 : vector<4x5x1xf32> to vector<4x5x5xf32>
    %221 = arith.divf %217, %220 : vector<4x5x5xf32>
    "tpu.trace_start"() <{level = 10 : i32, message = "hdj,hij->hdi"}> : () -> ()
    %cst_91 = arith.constant dense<0.000000e+00> : vector<4x8x5xf32>
    %222 = tpu.matmul %211, %221, %cst_91 {dimension_numbers = #tpu.dot_dimension_numbers<[2], [2], [1], [1], [0, 0, 0, 1, 1, 1], [0], [0]>} : vector<4x8x5xf32>, vector<4x5x5xf32>, vector<4x8x5xf32> -> vector<4x8x5xf32>
    "tpu.trace_stop"() : () -> ()
    %223 = vector.shape_cast %222 : vector<4x8x5xf32> to vector<32x5xf32>
    %c1_92 = arith.constant 1 : index
    %c96_93 = arith.constant 96 : index
    %c0_94 = arith.constant 0 : index
    %224 = vector.load %arg3[%c1_92, %c96_93, %c0_94] : memref<2x296x128xf32, #tpu.memory_space<vmem>>, vector<1x32x32xf32>
    %225 = vector.shape_cast %224 : vector<1x32x32xf32> to vector<32x32xf32>
    %cst_95 = arith.constant dense<0.000000e+00> : vector<5x32xf32>
    %226 = tpu.matmul %223, %225, %cst_95 {dimension_numbers = #tpu.dot_dimension_numbers<[0], [0], [1], [1], [0, 1, 1, 1], [], []>} : vector<32x5xf32>, vector<32x32xf32>, vector<5x32xf32> -> vector<5x32xf32>
    %227 = arith.addf %171, %226 : vector<5x32xf32>
    %c1_96 = arith.constant 1 : index
    %c292_97 = arith.constant 292 : index
    %c0_98 = arith.constant 0 : index
    %228 = vector.load %arg3[%c1_96, %c292_97, %c0_98] : memref<2x296x128xf32, #tpu.memory_space<vmem>>, vector<1x1x32xf32>
    %229 = vector.shape_cast %228 : vector<1x1x32xf32> to vector<1x32xf32>
    %230 = vector.broadcast %229 : vector<1x32xf32> to vector<5x32xf32>
    %231 = arith.addf %227, %230 : vector<5x32xf32>
    %c1_99 = arith.constant 1 : index
    %c290_100 = arith.constant 290 : index
    %c0_101 = arith.constant 0 : index
    %232 = vector.load %arg3[%c1_99, %c290_100, %c0_101] : memref<2x296x128xf32, #tpu.memory_space<vmem>>, vector<1x1x32xf32>
    %233 = vector.shape_cast %232 : vector<1x1x32xf32> to vector<1x32xf32>
    %c1_102 = arith.constant 1 : index
    %c291_103 = arith.constant 291 : index
    %c0_104 = arith.constant 0 : index
    %234 = vector.load %arg3[%c1_102, %c291_103, %c0_104] : memref<2x296x128xf32, #tpu.memory_space<vmem>>, vector<1x1x32xf32>
    %235 = vector.shape_cast %234 : vector<1x1x32xf32> to vector<1x32xf32>
    %cst_105 = arith.constant dense<0.000000e+00> : vector<5xf32>
    %236 = vector.multi_reduction <add>, %231, %cst_105 [1] : vector<5x32xf32> to vector<5xf32>
    %237 = vector.shape_cast %236 : vector<5xf32> to vector<5x1xf32>
    %cst_106 = arith.constant 3.200000e+01 : f32
    %238 = vector.broadcast %cst_106 : f32 to vector<5x1xf32>
    %239 = arith.divf %237, %238 : vector<5x1xf32>
    %240 = vector.broadcast %239 : vector<5x1xf32> to vector<5x32xf32>
    %241 = arith.subf %231, %240 : vector<5x32xf32>
    %242 = arith.mulf %241, %241 : vector<5x32xf32>
    %cst_107 = arith.constant dense<0.000000e+00> : vector<5xf32>
    %243 = vector.multi_reduction <add>, %242, %cst_107 [1] : vector<5x32xf32> to vector<5xf32>
    %244 = vector.shape_cast %243 : vector<5xf32> to vector<5x1xf32>
    %cst_108 = arith.constant 3.200000e+01 : f32
    %245 = vector.broadcast %cst_108 : f32 to vector<5x1xf32>
    %246 = arith.divf %244, %245 : vector<5x1xf32>
    %247 = vector.broadcast %239 : vector<5x1xf32> to vector<5x32xf32>
    %248 = arith.subf %231, %247 : vector<5x32xf32>
    %cst_109 = arith.constant 9.99999974E-6 : f32
    %249 = vector.broadcast %cst_109 : f32 to vector<5x1xf32>
    %250 = arith.addf %246, %249 : vector<5x1xf32>
    %251 = math.rsqrt %250 : vector<5x1xf32>
    %252 = vector.broadcast %251 : vector<5x1xf32> to vector<5x32xf32>
    %253 = arith.mulf %248, %252 : vector<5x32xf32>
    %254 = vector.broadcast %233 : vector<1x32xf32> to vector<5x32xf32>
    %255 = arith.mulf %253, %254 : vector<5x32xf32>
    %256 = vector.broadcast %235 : vector<1x32xf32> to vector<5x32xf32>
    %257 = arith.addf %255, %256 : vector<5x32xf32>
    %c1_110 = arith.constant 1 : index
    %c128_111 = arith.constant 128 : index
    %c0_112 = arith.constant 0 : index
    %258 = vector.load %arg3[%c1_110, %c128_111, %c0_112] : memref<2x296x128xf32, #tpu.memory_space<vmem>>, vector<1x32x128xf32>
    %259 = vector.shape_cast %258 : vector<1x32x128xf32> to vector<32x128xf32>
    %cst_113 = arith.constant dense<0.000000e+00> : vector<5x128xf32>
    %260 = tpu.matmul %257, %259, %cst_113 {dimension_numbers = #tpu.dot_dimension_numbers<[1], [0], [0], [1], [0, 0, 1, 1], [], []>} : vector<5x32xf32>, vector<32x128xf32>, vector<5x128xf32> -> vector<5x128xf32>
    %c1_114 = arith.constant 1 : index
    %c294_115 = arith.constant 294 : index
    %c0_116 = arith.constant 0 : index
    %261 = vector.load %arg3[%c1_114, %c294_115, %c0_116] : memref<2x296x128xf32, #tpu.memory_space<vmem>>, vector<1x1x128xf32>
    %262 = vector.shape_cast %261 : vector<1x1x128xf32> to vector<1x128xf32>
    %263 = vector.broadcast %262 : vector<1x128xf32> to vector<5x128xf32>
    %264 = arith.addf %260, %263 : vector<5x128xf32>
    %cst_117 = arith.constant 5.000000e-01 : f32
    %265 = vector.broadcast %cst_117 : f32 to vector<5x128xf32>
    %266 = arith.mulf %265, %264 : vector<5x128xf32>
    %cst_118 = arith.constant 0.707106769 : f32
    %267 = vector.broadcast %cst_118 : f32 to vector<5x128xf32>
    %268 = arith.mulf %264, %267 : vector<5x128xf32>
    %cst_119 = arith.constant 0.000000e+00 : f32
    %269 = vector.broadcast %cst_119 : f32 to vector<5x128xf32>
    %270 = arith.cmpf oge, %268, %269 : vector<5x128xf32>
    %cst_120 = arith.constant 1.000000e+00 : f32
    %cst_121 = arith.constant -1.000000e+00 : f32
    %271 = vector.broadcast %cst_120 : f32 to vector<5x128xf32>
    %272 = vector.broadcast %cst_121 : f32 to vector<5x128xf32>
    %273 = arith.select %270, %271, %272 : vector<5x128xi1>, vector<5x128xf32>
    %274 = math.absf %268 : vector<5x128xf32>
    %cst_122 = arith.constant 0.327591091 : f32
    %275 = vector.broadcast %cst_122 : f32 to vector<5x128xf32>
    %276 = arith.mulf %275, %274 : vector<5x128xf32>
    %cst_123 = arith.constant 1.000000e+00 : f32
    %277 = vector.broadcast %cst_123 : f32 to vector<5x128xf32>
    %278 = arith.addf %277, %276 : vector<5x128xf32>
    %cst_124 = arith.constant 1.000000e+00 : f32
    %279 = vector.broadcast %cst_124 : f32 to vector<5x128xf32>
    %280 = arith.divf %279, %278 : vector<5x128xf32>
    %cst_125 = arith.constant 1.06140542 : f32
    %281 = vector.broadcast %cst_125 : f32 to vector<5x128xf32>
    %282 = arith.mulf %281, %280 : vector<5x128xf32>
    %cst_126 = arith.constant -1.45315206 : f32
    %283 = vector.broadcast %cst_126 : f32 to vector<5x128xf32>
    %284 = arith.addf %282, %283 : vector<5x128xf32>
    %285 = arith.mulf %284, %280 : vector<5x128xf32>
    %cst_127 = arith.constant 1.42141378 : f32
    %286 = vector.broadcast %cst_127 : f32 to vector<5x128xf32>
    %287 = arith.addf %285, %286 : vector<5x128xf32>
    %288 = arith.mulf %287, %280 : vector<5x128xf32>
    %cst_128 = arith.constant -0.284496725 : f32
    %289 = vector.broadcast %cst_128 : f32 to vector<5x128xf32>
    %290 = arith.addf %288, %289 : vector<5x128xf32>
    %291 = arith.mulf %290, %280 : vector<5x128xf32>
    %cst_129 = arith.constant 0.254829586 : f32
    %292 = vector.broadcast %cst_129 : f32 to vector<5x128xf32>
    %293 = arith.addf %291, %292 : vector<5x128xf32>
    %294 = arith.mulf %293, %280 : vector<5x128xf32>
    %cst_130 = arith.constant 0.000000e+00 : f32
    %295 = vector.broadcast %cst_130 : f32 to vector<5x128xf32>
    %296 = arith.subf %295, %274 : vector<5x128xf32>
    %297 = arith.mulf %296, %274 : vector<5x128xf32>
    %298 = math.exp %297 : vector<5x128xf32>
    %299 = arith.mulf %294, %298 : vector<5x128xf32>
    %cst_131 = arith.constant 1.000000e+00 : f32
    %300 = vector.broadcast %cst_131 : f32 to vector<5x128xf32>
    %301 = arith.subf %300, %299 : vector<5x128xf32>
    %302 = arith.mulf %273, %301 : vector<5x128xf32>
    %cst_132 = arith.constant 1.000000e+00 : f32
    %303 = vector.broadcast %cst_132 : f32 to vector<5x128xf32>
    %304 = arith.addf %303, %302 : vector<5x128xf32>
    %305 = arith.mulf %266, %304 : vector<5x128xf32>
    %c1_133 = arith.constant 1 : index
    %c160_134 = arith.constant 160 : index
    %c0_135 = arith.constant 0 : index
    %306 = vector.load %arg3[%c1_133, %c160_134, %c0_135] : memref<2x296x128xf32, #tpu.memory_space<vmem>>, vector<1x128x32xf32>
    %307 = vector.shape_cast %306 : vector<1x128x32xf32> to vector<128x32xf32>
    %cst_136 = arith.constant dense<0.000000e+00> : vector<5x32xf32>
    %308 = tpu.matmul %305, %307, %cst_136 {dimension_numbers = #tpu.dot_dimension_numbers<[1], [0], [0], [1], [0, 0, 1, 1], [], []>} : vector<5x128xf32>, vector<128x32xf32>, vector<5x32xf32> -> vector<5x32xf32>
    %309 = arith.addf %231, %308 : vector<5x32xf32>
    %c1_137 = arith.constant 1 : index
    %c293_138 = arith.constant 293 : index
    %c0_139 = arith.constant 0 : index
    %310 = vector.load %arg3[%c1_137, %c293_138, %c0_139] : memref<2x296x128xf32, #tpu.memory_space<vmem>>, vector<1x1x32xf32>
    %311 = vector.shape_cast %310 : vector<1x1x32xf32> to vector<1x32xf32>
    %312 = vector.broadcast %311 : vector<1x32xf32> to vector<5x32xf32>
    %313 = arith.addf %309, %312 : vector<5x32xf32>
    %314 = vector.extract_strided_slice %313 {offsets = [0, 0], sizes = [1, 32], strides = [1, 1]} : vector<5x32xf32> to vector<1x32xf32>
    %c202 = arith.constant 202 : index
    %c0_140 = arith.constant 0 : index
    %315 = vector.load %arg2[%c202, %c0_140] : memref<240x128xf32, #tpu.memory_space<vmem>>, vector<1x32xf32>
    %c203 = arith.constant 203 : index
    %c0_141 = arith.constant 0 : index
    %316 = vector.load %arg2[%c203, %c0_141] : memref<240x128xf32, #tpu.memory_space<vmem>>, vector<1x32xf32>
    %cst_142 = arith.constant dense<0.000000e+00> : vector<1xf32>
    %317 = vector.multi_reduction <add>, %314, %cst_142 [1] : vector<1x32xf32> to vector<1xf32>
    %318 = vector.shape_cast %317 : vector<1xf32> to vector<1x1xf32>
    %cst_143 = arith.constant 3.200000e+01 : f32
    %319 = vector.broadcast %cst_143 : f32 to vector<1x1xf32>
    %320 = arith.divf %318, %319 : vector<1x1xf32>
    %321 = vector.broadcast %320 : vector<1x1xf32> to vector<1x32xf32>
    %322 = arith.subf %314, %321 : vector<1x32xf32>
    %323 = arith.mulf %322, %322 : vector<1x32xf32>
    %cst_144 = arith.constant dense<0.000000e+00> : vector<1xf32>
    %324 = vector.multi_reduction <add>, %323, %cst_144 [1] : vector<1x32xf32> to vector<1xf32>
    %325 = vector.shape_cast %324 : vector<1xf32> to vector<1x1xf32>
    %cst_145 = arith.constant 3.200000e+01 : f32
    %326 = vector.broadcast %cst_145 : f32 to vector<1x1xf32>
    %327 = arith.divf %325, %326 : vector<1x1xf32>
    %328 = vector.broadcast %320 : vector<1x1xf32> to vector<1x32xf32>
    %329 = arith.subf %314, %328 : vector<1x32xf32>
    %cst_146 = arith.constant 9.99999974E-6 : f32
    %330 = vector.broadcast %cst_146 : f32 to vector<1x1xf32>
    %331 = arith.addf %327, %330 : vector<1x1xf32>
    %332 = math.rsqrt %331 : vector<1x1xf32>
    %333 = vector.broadcast %332 : vector<1x1xf32> to vector<1x32xf32>
    %334 = arith.mulf %329, %333 : vector<1x32xf32>
    %335 = arith.mulf %334, %315 : vector<1x32xf32>
    %336 = arith.addf %335, %316 : vector<1x32xf32>
    %c208 = arith.constant 208 : index
    %c0_147 = arith.constant 0 : index
    %337 = vector.load %arg2[%c208, %c0_147] : memref<240x128xf32, #tpu.memory_space<vmem>>, vector<32x128xf32>
    %cst_148 = arith.constant dense<0.000000e+00> : vector<1x128xf32>
    %338 = tpu.matmul %336, %337, %cst_148 {dimension_numbers = #tpu.dot_dimension_numbers<[1], [0], [0], [1], [0, 0, 1, 1], [], []>} : vector<1x32xf32>, vector<32x128xf32>, vector<1x128xf32> -> vector<1x128xf32>
    %339 = vector.shape_cast %338 : vector<1x128xf32> to vector<1x128xf32>
    %340 = vector.broadcast %339 : vector<1x128xf32> to vector<8x128xf32>
    %c0_149 = arith.constant 0 : index
    %c0_150 = arith.constant 0 : index
    %c0_151 = arith.constant 0 : index
    %341 = vector.load %arg4[%c0_149, %c0_150, %c0_151] : memref<1x8x128xf32, #tpu.memory_space<vmem>>, vector<1x8x128xf32>
    %342 = vector.shape_cast %341 : vector<1x8x128xf32> to vector<8x128xf32>
    %343 = vector.shape_cast %340 : vector<8x128xf32> to vector<1x8x128xf32>
    tpu.vector_store %arg4[%c0_149, %c0_150, %c0_151], %343 {strides = array<i32>} : memref<1x8x128xf32, #tpu.memory_space<vmem>>, vector<1x8x128xf32>,
    return
  }
  func.func @transform_0(%arg0: i32) -> (i32, i32, i32) {
    %c0_i32 = arith.constant 0 : i32
    %c0_i32_0 = arith.constant 0 : i32
    %c0_i32_1 = arith.constant 0 : i32
    return %arg0, %c0_i32, %c0_i32_0 : i32, i32, i32
  }
  func.func @transform_1(%arg0: i32) -> (i32, i32) {
    %c0_i32 = arith.constant 0 : i32
    %c0_i32_0 = arith.constant 0 : i32
    %c0_i32_1 = arith.constant 0 : i32
    return %c0_i32, %c0_i32_0 : i32, i32
  }
  func.func @transform_2(%arg0: i32) -> (i32, i32, i32) {
    %c0_i32 = arith.constant 0 : i32
    %c0_i32_0 = arith.constant 0 : i32
    %c0_i32_1 = arith.constant 0 : i32
    %c0_i32_2 = arith.constant 0 : i32
    return %c0_i32, %c0_i32_0, %c0_i32_1 : i32, i32, i32
  }
  func.func @transform_3(%arg0: i32) -> (i32, i32, i32) {
    %c0_i32 = arith.constant 0 : i32
    %c0_i32_0 = arith.constant 0 : i32
    %c0_i32_1 = arith.constant 0 : i32
    return %arg0, %c0_i32, %c0_i32_0 : i32, i32, i32
  }
}

</mosaic_0001>

<llo_original>
// kernel: visual_transformer_forward.1
$region0: #{visual_transformer_forward.1}
  #allocation0 [shape = 'u32[]', space=smem, size = 0x4, offset = 0x4, fixed_abs, tag = 'smem constant byte address 0x4 - core index']
  #allocation1 [shape = 'u32[72,128]{1,0:T(1,128)}', space=vmem, size = 0x9000, scoped, tag = 'internal scratch']
  %s0 = inlined_call_operand.vmem [shape: f32[2,5,192], index: 0, kind: input, shape index: {}]
  %s1 = inlined_call_operand.vmem [shape: f32[240,128], index: 1, kind: input, shape index: {}]
  %s2 = inlined_call_operand.vmem [shape: f32[2,296,128], index: 2, kind: input, shape index: {}]
  %s3 = inlined_call_operand.vmem [shape: f32[2,8,128], index: 3, kind: output, shape index: {}]
  %s4 = sld [smem:[#allocation0]]
  $region45: #{visual_transformer_forward.1} parent=0
    _
  %s6 = ssub.s32 1, %s4
  %s7 = scalar_select 0, %s6, %s4
  loop: start=0, step=1, limit=4
  $region2: #{visual_transformer_forward.1} parent=0 // loop_pre_header
    _
  $region3: #{visual_transformer_forward.1} parent=0 // loop_header
    %s9 = sphi 0, %s13
    %p10 = scmp.ge.s32.totalorder %s9, 4
    %s19 = sphi 0, %s21
    %s22 = sphi 0, %s19
    %s23 = sphi 0, %s22
    %s39 = sphi 0, %s23
    %s43 = sphi 0, %s43
    %s45 = sphi 0, %s43
    %s46 = sphi 0, %s45
    %s60 = sphi 0, %s46
    %s64 = sphi 0, %s64
    %s66 = sphi 0, %s64
    %s67 = sphi 0, %s66
    %s81 = sphi 0, %s67
    %s87 = sphi 0, %s89
    %s90 = sphi 0, %s87
    %s91 = sphi 0, %s90
    %s107 = sphi 0, %s91
  $region4: #{visual_transformer_forward.1} parent=0 // loop_header_branch
    %12 = sbr.rel (%p10) target = $region8
  $region5: #{visual_transformer_forward.1} parent=0 // loop_body
    %s14 = ssub.s32 %s9, 1
    %s15 = ssub.s32 %s9, 2
    %s16 = sadd.s32 %s9, 1
    %s17 = ssub.s32 %s9, %s16
    %p18 = scmp.eq.s32.totalorder %s17, 0
    %s20 = sadd.s32 %s19, 1
    %s21 = scalar_select %p18, %s19, %s20
    %p24 = pneg %p18
    %p25 = scmp.eq.s32.totalorder %s9, 1
    %p26 = por %p24, %p25
    %p27 = scmp.ne.s32.totalorder %s19, %s22
    %p28 = scmp.eq.s32.totalorder %s9, 0
    %p29 = por %p27, %p28
    %p30 = scmp.ne.s32.totalorder %s19, %s22
    %p31 = scmp.eq.s32.totalorder %s14, 1
    %p32 = por %p30, %p31
    %p33 = scmp.ne.s32.totalorder %s22, %s23
    %p34 = scmp.eq.s32.totalorder %s14, 0
    %p35 = por %p33, %p34
    %p36 = scmp.ne.s32.totalorder %s22, %s23
    %p37 = scmp.eq.s32.totalorder %s15, 1
    %p38 = por %p36, %p37
    %p40 = scmp.ne.s32.totalorder %s23, %s39
    %p41 = scmp.eq.s32.totalorder %s15, 0
    %p42 = por %p40, %p41
    %s44 = sadd.s32 %s43, 1
    %p47 = scmp.eq.s32.totalorder %s9, 1
    %p48 = scmp.ne.s32.totalorder %s43, %s45
    %p49 = scmp.eq.s32.totalorder %s9, 0
    %p50 = por %p48, %p49
    %p51 = scmp.ne.s32.totalorder %s43, %s45
    %p52 = scmp.eq.s32.totalorder %s14, 1
    %p53 = por %p51, %p52
    %p54 = scmp.ne.s32.totalorder %s45, %s46
    %p55 = scmp.eq.s32.totalorder %s14, 0
    %p56 = por %p54, %p55
    %p57 = scmp.ne.s32.totalorder %s45, %s46
    %p58 = scmp.eq.s32.totalorder %s15, 1
    %p59 = por %p57, %p58
    %p61 = scmp.ne.s32.totalorder %s46, %s60
    %p62 = scmp.eq.s32.totalorder %s15, 0
    %p63 = por %p61, %p62
    %s65 = sadd.s32 %s64, 1
    %p68 = scmp.eq.s32.totalorder %s9, 1
    %p69 = scmp.ne.s32.totalorder %s64, %s66
    %p70 = scmp.eq.s32.totalorder %s9, 0
    %p71 = por %p69, %p70
    %p72 = scmp.ne.s32.totalorder %s64, %s66
    %p73 = scmp.eq.s32.totalorder %s14, 1
    %p74 = por %p72, %p73
    %p75 = scmp.ne.s32.totalorder %s66, %s67
    %p76 = scmp.eq.s32.totalorder %s14, 0
    %p77 = por %p75, %p76
    %p78 = scmp.ne.s32.totalorder %s66, %s67
    %p79 = scmp.eq.s32.totalorder %s15, 1
    %p80 = por %p78, %p79
    %p82 = scmp.ne.s32.totalorder %s67, %s81
    %p83 = scmp.eq.s32.totalorder %s15, 0
    %p84 = por %p82, %p83
    %s85 = ssub.s32 %s9, %s16
    %p86 = scmp.eq.s32.totalorder %s85, 0
    %s88 = sadd.s32 %s87, 1
    %s89 = scalar_select %p86, %s87, %s88
    %p92 = pneg %p86
    %p93 = scmp.eq.s32.totalorder %s9, 1
    %p94 = por %p92, %p93
    %p95 = scmp.ne.s32.totalorder %s87, %s90
    %p96 = scmp.eq.s32.totalorder %s9, 0
    %p97 = por %p95, %p96
    %p98 = scmp.ne.s32.totalorder %s87, %s90
    %p99 = scmp.eq.s32.totalorder %s14, 1
    %p100 = por %p98, %p99
    %p101 = scmp.ne.s32.totalorder %s90, %s91
    %p102 = scmp.eq.s32.totalorder %s14, 0
    %p103 = por %p101, %p102
    %p104 = scmp.ne.s32.totalorder %s90, %s91
    %p105 = scmp.eq.s32.totalorder %s15, 1
    %p106 = por %p104, %p105
    %p108 = scmp.ne.s32.totalorder %s91, %s107
    %p109 = scmp.eq.s32.totalorder %s15, 0
    %p110 = por %p108, %p109
    %p111 = scmp.le.s32.totalorder 1, %s9
    %p112 = scmp.lt.s32.totalorder %s9, 3
    %p113 = pnand %p111, %p112
    %p114 = pneg %p113
    // Predicated region
    $region9: #{visual_transformer_forward.1} parent=5 // pred_check
      _
    $region10: #{visual_transformer_forward.1} parent=5 // pred_check_branch
      %116 = sbr.rel (%p113) target = $region12
    $region11: #{visual_transformer_forward.1} parent=5 // pred_region
      %s117 = ssub.s32 %s9, 1
      // Predicated region
      $region13: #{visual_transformer_forward.1} parent=11 // pred_check
        %p118 = pneg %p56
      $region14: #{visual_transformer_forward.1} parent=11 // pred_check_branch
        %120 = sbr.rel (%p118) target = $region16
      $region15: #{visual_transformer_forward.1} parent=11 // pred_region
        _
      $region16: #{visual_transformer_forward.1} parent=11 // pred_fallthru
        _
      // Predicated region
      $region17: #{visual_transformer_forward.1} parent=11 // pred_check
        %p121 = pneg %p77
      $region18: #{visual_transformer_forward.1} parent=11 // pred_check_branch
        %123 = sbr.rel (%p121) target = $region20
      $region19: #{visual_transformer_forward.1} parent=11 // pred_region
        _
      $region20: #{visual_transformer_forward.1} parent=11 // pred_fallthru
        _
    $region12: #{visual_transformer_forward.1} parent=5 // pred_fallthru
      _
    %p124 = scmp.lt.s32.totalorder %s9, 2
    // Predicated region
    $region21: #{visual_transformer_forward.1} parent=5 // pred_check
      %p125 = pneg %p124
    $region22: #{visual_transformer_forward.1} parent=5 // pred_check_branch
      %127 = sbr.rel (%p125) target = $region24
    $region23: #{visual_transformer_forward.1} parent=5 // pred_region
      // Predicated region
      $region25: #{visual_transformer_forward.1} parent=23 // pred_check
        %p128 = pneg %p29
      $region26: #{visual_transformer_forward.1} parent=23 // pred_check_branch
        %130 = sbr.rel (%p128) target = $region28
      $region27: #{visual_transformer_forward.1} parent=23 // pred_region
        %p131 = scmp.lt.s32.totalorder %s9, 1
        %s132 = scalar_select %p131, %s9, 1
        %s133 = smul.addr %s132, 2
        %s134 = smul.addr %s133, 8
        %s135 = scalar_lea.vmem %s0, %s134
      $region28: #{visual_transformer_forward.1} parent=23 // pred_fallthru
        _
    $region24: #{visual_transformer_forward.1} parent=5 // pred_fallthru
      _
    %p136 = scmp.le.s32.totalorder 1, %s9
    %p137 = scmp.lt.s32.totalorder %s9, 3
    %p138 = pnand %p136, %p137
    %p139 = pneg %p138
    // Predicated region
    $region29: #{visual_transformer_forward.1} parent=5 // pred_check
      _
    $region30: #{visual_transformer_forward.1} parent=5 // pred_check_branch
      %141 = sbr.rel (%p138) target = $region32
    $region31: #{visual_transformer_forward.1} parent=5 // pred_region
      %s142 = ssub.s32 %s9, 1
      %p143 = scmp.lt.s32.totalorder %s14, 1
      %s144 = scalar_select %p143, %s14, 1
      %s145 = smul.addr %s144, 2
      %s146 = smul.addr %s145, 8
      %s147 = scalar_lea.vmem %s0, %s146
      %p148 = pneg %p35
      %p149 = pneg %p32
      %p150 = pneg %p56
      %p151 = pneg %p53
      %p152 = pneg %p77
      %p153 = pneg %p74
      %p154 = pneg %p103
      %p155 = pneg %p100
      %p156 = scmp.lt.s32.totalorder %s14, 1
      %s157 = scalar_select %p156, %s14, 1
      %s158 = smul.addr %s157, 8
      %s159 = scalar_lea.vmem %s3, %s158
      %p160 = scmp.lt.s32.totalorder %s14, 1
      %s161 = scalar_select %p160, %s14, 1
      %s162 = smul.addr %s161, 2
      %s163 = smul.addr %s162, 8
      %s164 = scalar_lea.vmem %s0, %s163
      %p165 = scmp.lt.s32.totalorder %s14, 1
      %s166 = scalar_select %p165, %s14, 1
      %s167 = smul.addr %s166, 8
      %s168 = scalar_lea.vmem %s3, %s167
      %v169 = vld [vmem:[%s164] sm:$0x1f]
      %v170 = vld [vmem:[%s164 + $0x8] sm:$0x1f]
      %v171 = vld [vmem:[%s1] sm:$0xff]
      %v172 = vld [vmem:[%s1 + $0x8] sm:$0xff]
      %v173 = vld [vmem:[%s1 + $0x10] sm:$0xff]
      %v174 = vld [vmem:[%s1 + $0x18] sm:$0xff]
      %v175 = vld [vmem:[%s1 + $0x20] sm:$0xff]
      %v176 = vld [vmem:[%s1 + $0x28] sm:$0xff]
      %v177 = vld [vmem:[%s1 + $0x30] sm:$0xff]
      %v178 = vld [vmem:[%s1 + $0x38] sm:$0xff]
      %v179 = vld [vmem:[%s1 + $0x40] sm:$0xff]
      %v180 = vld [vmem:[%s1 + $0x48] sm:$0xff]
      %v181 = vld [vmem:[%s1 + $0x50] sm:$0xff]
      %v182 = vld [vmem:[%s1 + $0x58] sm:$0xff]
      %v183 = vld [vmem:[%s1 + $0x60] sm:$0xff]
      %v184 = vld [vmem:[%s1 + $0x68] sm:$0xff]
      %v185 = vld [vmem:[%s1 + $0x70] sm:$0xff]
      %v186 = vld [vmem:[%s1 + $0x78] sm:$0xff]
      %v187 = vld [vmem:[%s1 + $0x80] sm:$0xff]
      %v188 = vld [vmem:[%s1 + $0x88] sm:$0xff]
      %v189 = vld [vmem:[%s1 + $0x90] sm:$0xff]
      %v190 = vld [vmem:[%s1 + $0x98] sm:$0xff]
      %v191 = vld [vmem:[%s1 + $0xa0] sm:$0xff]
      %v192 = vld [vmem:[%s1 + $0xa8] sm:$0xff]
      %v193 = vld [vmem:[%s1 + $0xb0] sm:$0xff]
      %v194 = vld [vmem:[%s1 + $0xb8] sm:$0xff]
      %v195 = vld [vmem:[%s1 + $0xc0] sm:$0x1f]
      %vm196 = vcmask 523264
      %v198 = vsel %vm196, %v170, 0
      %200 = vmatpush.msra.mxu0 %v186
      %201 = vmatpush.msra.mxu0 %v185
      %202 = vmatpush.msra.mxu0 %v184
      %203 = vmatpush.msra.mxu0 %v183
      %204 = vmatpush.msra.mxu0 %v182
      %205 = vmatpush.msra.mxu0 %v181
      %206 = vmatpush.msra.mxu0 %v180
      %207 = vmatpush.msra.mxu0 %v179
      %208 = vmatpush.msra.mxu0 %v178
      %209 = vmatpush.msra.mxu0 %v177
      %210 = vmatpush.msra.mxu0 %v176
      %211 = vmatpush.msra.mxu0 %v175
      %212 = vmatpush.msra.mxu0 %v174
      %213 = vmatpush.msra.mxu0 %v173
      %214 = vmatpush.msra.mxu0 %v172
      %215 = vmatpush.msra.mxu0 %v171
      %216 = vmatmul.f32.gmra.mxu0 %v169
      %v217 = vpop.f32.mrf.mxu0
      %v218 = vadd.f32 %v195, %v217
      %219 = vdwg.mxu0
      %220 = vmatpush.msra.mxu0 0.0
      %221 = vmatpush.msra.mxu0 0.0
      %222 = vmatpush.msra.mxu0 0.0
      %223 = vmatpush.msra.mxu0 0.0
      %224 = vmatpush.msra.mxu0 0.0
      %225 = vmatpush.msra.mxu0 0.0
      %226 = vmatpush.msra.mxu0 0.0
      %227 = vmatpush.msra.mxu0 0.0
      %228 = vmatpush.msra.mxu0 %v194
      %229 = vmatpush.msra.mxu0 %v193
      %230 = vmatpush.msra.mxu0 %v192
      %231 = vmatpush.msra.mxu0 %v191
      %232 = vmatpush.msra.mxu0 %v190
      %233 = vmatpush.msra.mxu0 %v189
      %234 = vmatpush.msra.mxu0 %v188
      %235 = vmatpush.msra.mxu0 %v187
      %236 = vmatmul.f32.gmra.mxu0 %v198
      %v237 = vpop.f32.mrf.mxu0
      %v238 = vadd.f32 %v218, %v237
      %239 = vdwg.mxu0
      %v240 = vld [vmem:[%s1 + $0xc8] sm:$0x1]
      %v241 = vld [vmem:[%s1 + $0xc9] sm:$0x1]
      %vm242 = vcmask 258048
      %v243 = vsel %vm242, %v238, 0.0
      %244 = vadd.xlane.f32.xlu0 %v243
      %v245 = vpop.xlane.xlu0 %244
      %v246 = vrcp.pop 32.0
      %v247 = vmul.f32 32.0, %v246
      %v248 = vsub.f32 1.0, %v247
      %v249 = vmul.f32 %v246, %v248
      %v250 = vadd.f32 %v246, %v249
      %vm251 = vweird.f32 %v246
      %v252 = vsel %vm251, %v246, %v250
      %v253 = vmul.f32 %v245, %v252
      %v254 = vsub.f32 %v238, %v253
      %v255 = vmul.f32 %v254, %v254
      %v256 = vsel %vm242, %v255, 0.0
      %257 = vadd.xlane.f32.xlu0 %v256
      %v258 = vpop.xlane.xlu0 %257
      %v259 = vmul.f32 %v258, %v252
      %v260 = vadd.f32 %v259, 1e-05
      %v261 = vrsqrt.pop %v260
      %v262 = vmul.f32 %v261, %v260
      %v263 = vmul.f32 %v262, %v261
      %v264 = vmul.f32 0.5, %v263
      %v265 = vsub.f32 1.5, %v264
      %v266 = vmul.f32 %v261, %v265
      %vm267 = vweird.f32 %v260
      %vm268 = vweird.f32 %v261
      %vm269 = vmor %vm267, %vm268
      %v270 = vsel %vm269, %v261, %v266
      %v271 = vmul.f32 %v254, %v270
      %v272 = vperm.slane %v240, 0
      %v273 = vmul.f32 %v271, %v272
      %v274 = vperm.slane %v241, 0
      %v275 = vadd.f32 %v273, %v274
      %v276 = vld [vmem:[%s2 + $0x120] sm:$0x1]
      %v277 = vld [vmem:[%s2 + $0x121] sm:$0x1]
      %v278 = vsel %vm242, %v275, 0.0
      %279 = vadd.xlane.f32.xlu0 %v278
      %v280 = vpop.xlane.xlu0 %279
      %v281 = vmul.f32 %v280, %v252
      %v282 = vsub.f32 %v275, %v281
      %v283 = vmul.f32 %v282, %v282
      %v284 = vsel %vm242, %v283, 0.0
      %285 = vadd.xlane.f32.xlu0 %v284
      %v286 = vpop.xlane.xlu0 %285
      %v287 = vmul.f32 %v286, %v252
      %v288 = vadd.f32 %v287, 1e-05
      %v289 = vrsqrt.pop %v288
      %v290 = vmul.f32 %v289, %v288
      %v291 = vmul.f32 %v290, %v289
      %v292 = vmul.f32 0.5, %v291
      %v293 = vsub.f32 1.5, %v292
      %v294 = vmul.f32 %v289, %v293
      %vm295 = vweird.f32 %v288
      %vm296 = vweird.f32 %v289
      %vm297 = vmor %vm295, %vm296
      %v298 = vsel %vm297, %v289, %v294
      %v299 = vmul.f32 %v282, %v298
      %v300 = vperm.slane %v276, 0
      %v301 = vmul.f32 %v299, %v300
      %v302 = vperm.slane %v277, 0
      %v303 = vadd.f32 %v301, %v302
      %v304 = vld [vmem:[%s2] sm:$0xff]
      %v305 = vld [vmem:[%s2 + $0x8] sm:$0xff]
      %v306 = vld [vmem:[%s2 + $0x10] sm:$0xff]
      %v307 = vld [vmem:[%s2 + $0x18] sm:$0xff]
      %v308 = vld [vmem:[%s2 + $0x20] sm:$0xff]
      %v309 = vld [vmem:[%s2 + $0x28] sm:$0xff]
      %v310 = vld [vmem:[%s2 + $0x30] sm:$0xff]
      %v311 = vld [vmem:[%s2 + $0x38] sm:$0xff]
      %v312 = vld [vmem:[%s2 + $0x40] sm:$0xff]
      %v313 = vld [vmem:[%s2 + $0x48] sm:$0xff]
      %v314 = vld [vmem:[%s2 + $0x50] sm:$0xff]
      %v315 = vld [vmem:[%s2 + $0x58] sm:$0xff]
      %317 = vset.pattern.permute.xlu0 32
      %318 = vperm.xlu0 %317, %v304
      %v319 = vpop.permute.xlu0 %318
      %322 = vset.pattern.permute.xlu0 32
      %323 = vperm.xlu0 %322, %v305
      %v324 = vpop.permute.xlu0 %323
      %327 = vset.pattern.permute.xlu0 32
      %328 = vperm.xlu0 %327, %v306
      %v329 = vpop.permute.xlu0 %328
      %332 = vset.pattern.permute.xlu0 32
      %333 = vperm.xlu0 %332, %v307
      %v334 = vpop.permute.xlu0 %333
      %337 = vset.pattern.permute.xlu0 32
      %338 = vperm.xlu0 %337, %v308
      %v339 = vpop.permute.xlu0 %338
      %342 = vset.pattern.permute.xlu0 32
      %343 = vperm.xlu0 %342, %v309
      %v344 = vpop.permute.xlu0 %343
      %347 = vset.pattern.permute.xlu0 32
      %348 = vperm.xlu0 %347, %v310
      %v349 = vpop.permute.xlu0 %348
      %352 = vset.pattern.permute.xlu0 32
      %353 = vperm.xlu0 %352, %v311
      %v354 = vpop.permute.xlu0 %353
      %357 = vset.pattern.permute.xlu0 32
      %358 = vperm.xlu0 %357, %v312
      %v359 = vpop.permute.xlu0 %358
      %362 = vset.pattern.permute.xlu0 32
      %363 = vperm.xlu0 %362, %v313
      %v364 = vpop.permute.xlu0 %363
      %367 = vset.pattern.permute.xlu0 32
      %368 = vperm.xlu0 %367, %v314
      %v369 = vpop.permute.xlu0 %368
      %372 = vset.pattern.permute.xlu0 32
      %373 = vperm.xlu0 %372, %v315
      %v374 = vpop.permute.xlu0 %373
      %vm376 = vcmask 261120
      %v377 = vsel %vm376, %v304, 0
      %v379 = vsel %vm376, %v305, 0
      %v381 = vsel %vm376, %v306, 0
      %v383 = vsel %vm376, %v307, 0
      %v385 = vsel %vm376, %v308, 0
      %v387 = vsel %vm376, %v309, 0
      %v389 = vsel %vm376, %v310, 0
      %v391 = vsel %vm376, %v311, 0
      %v393 = vsel %vm376, %v312, 0
      %v395 = vsel %vm376, %v313, 0
      %v397 = vsel %vm376, %v314, 0
      %v399 = vsel %vm376, %v315, 0
      %v402 = vsel %vm376, %v303, 0
      %404 = vmatpush.xpose.msra.mxu0 0.0
      %405 = vmatpush.xpose.msra.mxu0 0.0
      %406 = vmatpush.xpose.msra.mxu0 0.0
      %407 = vmatpush.xpose.msra.mxu0 0.0
      %408 = vmatpush.xpose.msra.mxu0 0.0
      %409 = vmatpush.xpose.msra.mxu0 0.0
      %410 = vmatpush.xpose.msra.mxu0 0.0
      %411 = vmatpush.xpose.msra.mxu0 0.0
      %412 = vmatpush.xpose.msra.mxu0 0.0
      %413 = vmatpush.xpose.msra.mxu0 0.0
      %414 = vmatpush.xpose.msra.mxu0 0.0
      %415 = vmatpush.xpose.msra.mxu0 0.0
      %416 = vmatpush.xpose.msra.mxu0 0.0
      %417 = vmatpush.xpose.msra.mxu0 0.0
      %418 = vmatpush.xpose.msra.mxu0 0.0
      %419 = vmatpush.xpose.msra.mxu0 %v402
      %420 = vmatmul.f32.gmra.mxu0 %v377
      %v421 = vpop.f32.mrf.mxu0
      %v422 = vadd.f32 %v319, %v421
      %423 = vmatmul.f32.gmra.mxu0 %v379
      %v424 = vpop.f32.mrf.mxu0
      %v425 = vadd.f32 %v324, %v424
      %426 = vmatmul.f32.gmra.mxu0 %v381
      %v427 = vpop.f32.mrf.mxu0
      %v428 = vadd.f32 %v329, %v427
      %429 = vmatmul.f32.gmra.mxu0 %v383
      %v430 = vpop.f32.mrf.mxu0
      %v431 = vadd.f32 %v334, %v430
      %432 = vmatmul.f32.gmra.mxu0 %v385
      %v433 = vpop.f32.mrf.mxu0
      %v434 = vadd.f32 %v339, %v433
      %435 = vmatmul.f32.gmra.mxu0 %v387
      %v436 = vpop.f32.mrf.mxu0
      %v437 = vadd.f32 %v344, %v436
      %438 = vmatmul.f32.gmra.mxu0 %v389
      %v439 = vpop.f32.mrf.mxu0
      %v440 = vadd.f32 %v349, %v439
      %441 = vmatmul.f32.gmra.mxu0 %v391
      %v442 = vpop.f32.mrf.mxu0
      %v443 = vadd.f32 %v354, %v442
      %444 = vmatmul.f32.gmra.mxu0 %v393
      %v445 = vpop.f32.mrf.mxu0
      %v446 = vadd.f32 %v359, %v445
      %447 = vmatmul.f32.gmra.mxu0 %v395
      %v448 = vpop.f32.mrf.mxu0
      %v449 = vadd.f32 %v364, %v448
      %450 = vmatmul.f32.gmra.mxu0 %v397
      %v451 = vpop.f32.mrf.mxu0
      %v452 = vadd.f32 %v369, %v451
      %453 = vmatmul.f32.gmra.mxu0 %v399
      %v454 = vpop.f32.mrf.mxu0
      %v455 = vadd.f32 %v374, %v454
      %456 = vdwg.mxu0
      %457 = vxpose.xlu0.b32.start [1/16] %v422, 128
      %458 = vxpose.xlu0.b32.cont [2/16] 0.0, 128
      %459 = vxpose.xlu0.b32.cont [3/16] 0.0, 128
      %460 = vxpose.xlu0.b32.cont [4/16] 0.0, 128
      %461 = vxpose.xlu0.b32.cont [5/16] 0.0, 128
      %462 = vxpose.xlu0.b32.cont [6/16] 0.0, 128
      %463 = vxpose.xlu0.b32.cont [7/16] 0.0, 128
      %464 = vxpose.xlu0.b32.cont [8/16] 0.0, 128
      %465 = vxpose.xlu0.b32.cont [9/16] 0.0, 128
      %466 = vxpose.xlu0.b32.cont [10/16] 0.0, 128
      %467 = vxpose.xlu0.b32.cont [11/16] 0.0, 128
      %468 = vxpose.xlu0.b32.cont [12/16] 0.0, 128
      %469 = vxpose.xlu0.b32.cont [13/16] 0.0, 128
      %470 = vxpose.xlu0.b32.cont [14/16] 0.0, 128
      %471 = vxpose.xlu0.b32.cont [15/16] 0.0, 128
      %472 = vxpose.xlu0.b32.end [16/16] 0.0, 128
      %v473 = vpop.trf.xlu0
      %v474 = vpop.trf.xlu0
      %v475 = vpop.trf.xlu0
      %v476 = vpop.trf.xlu0
      %v477 = vpop.trf.xlu0
      %v478 = vpop.trf.xlu0
      %v479 = vpop.trf.xlu0
      %v480 = vpop.trf.xlu0
      %v481 = vpop.trf.xlu0
      %v482 = vpop.trf.xlu0
      %v483 = vpop.trf.xlu0
      %v484 = vpop.trf.xlu0
      %v485 = vpop.trf.xlu0
      %v486 = vpop.trf.xlu0
      %v487 = vpop.trf.xlu0
      %v488 = vpop.trf.xlu0
      %vm489 = vcmask 64512
      %v491 = vsel %vm489, %v473, 0
      %493 = vmatpush.msra.mxu0 0.0
      %494 = vmatpush.msra.mxu0 0.0
      %495 = vmatpush.msra.mxu0 0.0
      %496 = vmatpush.msra.mxu0 0.0
      %497 = vmatpush.msra.mxu0 0.0
      %498 = vmatpush.msra.mxu0 0.0
      %499 = vmatpush.msra.mxu0 0.0
      %500 = vmatpush.msra.mxu0 0.0
      %501 = vmatpush.msra.mxu0 0.0
      %502 = vmatpush.msra.mxu0 0.0
      %503 = vmatpush.msra.mxu0 0.0
      %504 = vmatpush.msra.mxu0 0.0
      %505 = vmatpush.msra.mxu0 0.0
      %506 = vmatpush.msra.mxu0 0.0
      %507 = vmatpush.msra.mxu0 0.0
      %508 = vmatpush.msra.mxu0 %v434
      %509 = vmatmul.f32.gmra.mxu0 %v491
      %v510 = vpop.f32.mrf.mxu0
      %v511 = vadd.f32 0.0, %v510
      %512 = vdwg.mxu0
      %513 = vxpose.xlu0.b32.start [1/16] %v425, 128
      %514 = vxpose.xlu0.b32.cont [2/16] 0.0, 128
      %515 = vxpose.xlu0.b32.cont [3/16] 0.0, 128
      %516 = vxpose.xlu0.b32.cont [4/16] 0.0, 128
      %517 = vxpose.xlu0.b32.cont [5/16] 0.0, 128
      %518 = vxpose.xlu0.b32.cont [6/16] 0.0, 128
      %519 = vxpose.xlu0.b32.cont [7/16] 0.0, 128
      %520 = vxpose.xlu0.b32.cont [8/16] 0.0, 128
      %521 = vxpose.xlu0.b32.cont [9/16] 0.0, 128
      %522 = vxpose.xlu0.b32.cont [10/16] 0.0, 128
      %523 = vxpose.xlu0.b32.cont [11/16] 0.0, 128
      %524 = vxpose.xlu0.b32.cont [12/16] 0.0, 128
      %525 = vxpose.xlu0.b32.cont [13/16] 0.0, 128
      %526 = vxpose.xlu0.b32.cont [14/16] 0.0, 128
      %527 = vxpose.xlu0.b32.cont [15/16] 0.0, 128
      %528 = vxpose.xlu0.b32.end [16/16] 0.0, 128
      %v529 = vpop.trf.xlu0
      %v530 = vpop.trf.xlu0
      %v531 = vpop.trf.xlu0
      %v532 = vpop.trf.xlu0
      %v533 = vpop.trf.xlu0
      %v534 = vpop.trf.xlu0
      %v535 = vpop.trf.xlu0
      %v536 = vpop.trf.xlu0
      %v537 = vpop.trf.xlu0
      %v538 = vpop.trf.xlu0
      %v539 = vpop.trf.xlu0
      %v540 = vpop.trf.xlu0
      %v541 = vpop.trf.xlu0
      %v542 = vpop.trf.xlu0
      %v543 = vpop.trf.xlu0
      %v544 = vpop.trf.xlu0
      %v546 = vsel %vm489, %v529, 0
      %548 = vmatpush.msra.mxu0 0.0
      %549 = vmatpush.msra.mxu0 0.0
      %550 = vmatpush.msra.mxu0 0.0
      %551 = vmatpush.msra.mxu0 0.0
      %552 = vmatpush.msra.mxu0 0.0
      %553 = vmatpush.msra.mxu0 0.0
      %554 = vmatpush.msra.mxu0 0.0
      %555 = vmatpush.msra.mxu0 0.0
      %556 = vmatpush.msra.mxu0 0.0
      %557 = vmatpush.msra.mxu0 0.0
      %558 = vmatpush.msra.mxu0 0.0
      %559 = vmatpush.msra.mxu0 0.0
      %560 = vmatpush.msra.mxu0 0.0
      %561 = vmatpush.msra.mxu0 0.0
      %562 = vmatpush.msra.mxu0 0.0
      %563 = vmatpush.msra.mxu0 %v437
      %564 = vmatmul.f32.gmra.mxu0 %v546
      %v565 = vpop.f32.mrf.mxu0
      %v566 = vadd.f32 0.0, %v565
      %567 = vdwg.mxu0
      %568 = vxpose.xlu0.b32.start [1/16] %v428, 128
      %569 = vxpose.xlu0.b32.cont [2/16] 0.0, 128
      %570 = vxpose.xlu0.b32.cont [3/16] 0.0, 128
      %571 = vxpose.xlu0.b32.cont [4/16] 0.0, 128
      %572 = vxpose.xlu0.b32.cont [5/16] 0.0, 128
      %573 = vxpose.xlu0.b32.cont [6/16] 0.0, 128
      %574 = vxpose.xlu0.b32.cont [7/16] 0.0, 128
      %575 = vxpose.xlu0.b32.cont [8/16] 0.0, 128
      %576 = vxpose.xlu0.b32.cont [9/16] 0.0, 128
      %577 = vxpose.xlu0.b32.cont [10/16] 0.0, 128
      %578 = vxpose.xlu0.b32.cont [11/16] 0.0, 128
      %579 = vxpose.xlu0.b32.cont [12/16] 0.0, 128
      %580 = vxpose.xlu0.b32.cont [13/16] 0.0, 128
      %581 = vxpose.xlu0.b32.cont [14/16] 0.0, 128
      %582 = vxpose.xlu0.b32.cont [15/16] 0.0, 128
      %583 = vxpose.xlu0.b32.end [16/16] 0.0, 128
      %v584 = vpop.trf.xlu0
      %v585 = vpop.trf.xlu0
      %v586 = vpop.trf.xlu0
      %v587 = vpop.trf.xlu0
      %v588 = vpop.trf.xlu0
      %v589 = vpop.trf.xlu0
      %v590 = vpop.trf.xlu0
      %v591 = vpop.trf.xlu0
      %v592 = vpop.trf.xlu0
      %v593 = vpop.trf.xlu0
      %v594 = vpop.trf.xlu0
      %v595 = vpop.trf.xlu0
      %v596 = vpop.trf.xlu0
      %v597 = vpop.trf.xlu0
      %v598 = vpop.trf.xlu0
      %v599 = vpop.trf.xlu0
      %v601 = vsel %vm489, %v584, 0
      %603 = vmatpush.msra.mxu0 0.0
      %604 = vmatpush.msra.mxu0 0.0
      %605 = vmatpush.msra.mxu0 0.0
      %606 = vmatpush.msra.mxu0 0.0
      %607 = vmatpush.msra.mxu0 0.0
      %608 = vmatpush.msra.mxu0 0.0
      %609 = vmatpush.msra.mxu0 0.0
      %610 = vmatpush.msra.mxu0 0.0
      %611 = vmatpush.msra.mxu0 0.0
      %612 = vmatpush.msra.mxu0 0.0
      %613 = vmatpush.msra.mxu0 0.0
      %614 = vmatpush.msra.mxu0 0.0
      %615 = vmatpush.msra.mxu0 0.0
      %616 = vmatpush.msra.mxu0 0.0
      %617 = vmatpush.msra.mxu0 0.0
      %618 = vmatpush.msra.mxu0 %v440
      %619 = vmatmul.f32.gmra.mxu0 %v601
      %v620 = vpop.f32.mrf.mxu0
      %v621 = vadd.f32 0.0, %v620
      %622 = vdwg.mxu0
      %623 = vxpose.xlu0.b32.start [1/16] %v431, 128
      %624 = vxpose.xlu0.b32.cont [2/16] 0.0, 128
      %625 = vxpose.xlu0.b32.cont [3/16] 0.0, 128
      %626 = vxpose.xlu0.b32.cont [4/16] 0.0, 128
      %627 = vxpose.xlu0.b32.cont [5/16] 0.0, 128
      %628 = vxpose.xlu0.b32.cont [6/16] 0.0, 128
      %629 = vxpose.xlu0.b32.cont [7/16] 0.0, 128
      %630 = vxpose.xlu0.b32.cont [8/16] 0.0, 128
      %631 = vxpose.xlu0.b32.cont [9/16] 0.0, 128
      %632 = vxpose.xlu0.b32.cont [10/16] 0.0, 128
      %633 = vxpose.xlu0.b32.cont [11/16] 0.0, 128
      %634 = vxpose.xlu0.b32.cont [12/16] 0.0, 128
      %635 = vxpose.xlu0.b32.cont [13/16] 0.0, 128
      %636 = vxpose.xlu0.b32.cont [14/16] 0.0, 128
      %637 = vxpose.xlu0.b32.cont [15/16] 0.0, 128
      %638 = vxpose.xlu0.b32.end [16/16] 0.0, 128
      %v639 = vpop.trf.xlu0
      %v640 = vpop.trf.xlu0
      %v641 = vpop.trf.xlu0
      %v642 = vpop.trf.xlu0
      %v643 = vpop.trf.xlu0
      %v644 = vpop.trf.xlu0
      %v645 = vpop.trf.xlu0
      %v646 = vpop.trf.xlu0
      %v647 = vpop.trf.xlu0
      %v648 = vpop.trf.xlu0
      %v649 = vpop.trf.xlu0
      %v650 = vpop.trf.xlu0
      %v651 = vpop.trf.xlu0
      %v652 = vpop.trf.xlu0
      %v653 = vpop.trf.xlu0
      %v654 = vpop.trf.xlu0
      %v656 = vsel %vm489, %v639, 0
      %658 = vmatpush.msra.mxu0 0.0
      %659 = vmatpush.msra.mxu0 0.0
      %660 = vmatpush.msra.mxu0 0.0
      %661 = vmatpush.msra.mxu0 0.0
      %662 = vmatpush.msra.mxu0 0.0
      %663 = vmatpush.msra.mxu0 0.0
      %664 = vmatpush.msra.mxu0 0.0
      %665 = vmatpush.msra.mxu0 0.0
      %666 = vmatpush.msra.mxu0 0.0
      %667 = vmatpush.msra.mxu0 0.0
      %668 = vmatpush.msra.mxu0 0.0
      %669 = vmatpush.msra.mxu0 0.0
      %670 = vmatpush.msra.mxu0 0.0
      %671 = vmatpush.msra.mxu0 0.0
      %672 = vmatpush.msra.mxu0 0.0
      %673 = vmatpush.msra.mxu0 %v443
      %674 = vmatmul.f32.gmra.mxu0 %v656
      %v675 = vpop.f32.mrf.mxu0
      %v676 = vadd.f32 0.0, %v675
      %677 = vdwg.mxu0
      %vm678 = vcmask 36864
      %v679 = vsel %vm678, %v511, -inf
      %680 = vmax.xlane.f32.xlu0 %v679
      %v681 = vpop.xlane.xlu0 %680
      %v682 = vsel %vm678, %v566, -inf
      %683 = vmax.xlane.f32.xlu0 %v682
      %v684 = vpop.xlane.xlu0 %683
      %v685 = vsel %vm678, %v621, -inf
      %686 = vmax.xlane.f32.xlu0 %v685
      %v687 = vpop.xlane.xlu0 %686
      %v688 = vsel %vm678, %v676, -inf
      %689 = vmax.xlane.f32.xlu0 %v688
      %v690 = vpop.xlane.xlu0 %689
      %v691 = vsub.f32 %v511, %v681
      %v692 = vsub.f32 %v566, %v684
      %v693 = vsub.f32 %v621, %v687
      %v694 = vsub.f32 %v676, %v690
      %v695 = vmul.f32 %v691, 1.442695
      %v696 = vpow.pop %v695
      %v697 = vmul.f32 %v692, 1.442695
      %v698 = vpow.pop %v697
      %v699 = vmul.f32 %v693, 1.442695
      %v700 = vpow.pop %v699
      %v701 = vmul.f32 %v694, 1.442695
      %v702 = vpow.pop %v701
      %v703 = vsel %vm678, %v696, 0.0
      %704 = vadd.xlane.f32.xlu0 %v703
      %v705 = vpop.xlane.xlu0 %704
      %v706 = vsel %vm678, %v698, 0.0
      %707 = vadd.xlane.f32.xlu0 %v706
      %v708 = vpop.xlane.xlu0 %707
      %v709 = vsel %vm678, %v700, 0.0
      %710 = vadd.xlane.f32.xlu0 %v709
      %v711 = vpop.xlane.xlu0 %710
      %v712 = vsel %vm678, %v702, 0.0
      %713 = vadd.xlane.f32.xlu0 %v712
      %v714 = vpop.xlane.xlu0 %713
      %v715 = vrcp.pop %v705
      %v716 = vmul.f32 %v705, %v715
      %v717 = vsub.f32 1.0, %v716
      %v718 = vmul.f32 %v715, %v717
      %v719 = vadd.f32 %v715, %v718
      %vm720 = vweird.f32 %v705
      %vm721 = vweird.f32 %v715
      %vm722 = vmor %vm720, %vm721
      %v723 = vsel %vm722, %v715, %v719
      %v724 = vand.u32 2147483647, %v705
      %vm725 = vcmp.eq.f32.partialorder %v724, 8.507059e+37
      %v726 = vand.u32 %v705, 2147483648
      %v727 = vor.u32 1.1754944e-38, %v726
      %v728 = vsel %vm725, %v727, %v723
      %v729 = vmul.f32 %v696, %v728
      %v730 = vrcp.pop %v708
      %v731 = vmul.f32 %v708, %v730
      %v732 = vsub.f32 1.0, %v731
      %v733 = vmul.f32 %v730, %v732
      %v734 = vadd.f32 %v730, %v733
      %vm735 = vweird.f32 %v708
      %vm736 = vweird.f32 %v730
      %vm737 = vmor %vm735, %vm736
      %v738 = vsel %vm737, %v730, %v734
      %v739 = vand.u32 2147483647, %v708
      %vm740 = vcmp.eq.f32.partialorder %v739, 8.507059e+37
      %v741 = vand.u32 %v708, 2147483648
      %v742 = vor.u32 1.1754944e-38, %v741
      %v743 = vsel %vm740, %v742, %v738
      %v744 = vmul.f32 %v698, %v743
      %v745 = vrcp.pop %v711
      %v746 = vmul.f32 %v711, %v745
      %v747 = vsub.f32 1.0, %v746
      %v748 = vmul.f32 %v745, %v747
      %v749 = vadd.f32 %v745, %v748
      %vm750 = vweird.f32 %v711
      %vm751 = vweird.f32 %v745
      %vm752 = vmor %vm750, %vm751
      %v753 = vsel %vm752, %v745, %v749
      %v754 = vand.u32 2147483647, %v711
      %vm755 = vcmp.eq.f32.partialorder %v754, 8.507059e+37
      %v756 = vand.u32 %v711, 2147483648
      %v757 = vor.u32 1.1754944e-38, %v756
      %v758 = vsel %vm755, %v757, %v753
      %v759 = vmul.f32 %v700, %v758
      %v760 = vrcp.pop %v714
      %v761 = vmul.f32 %v714, %v760
      %v762 = vsub.f32 1.0, %v761
      %v763 = vmul.f32 %v760, %v762
      %v764 = vadd.f32 %v760, %v763
      %vm765 = vweird.f32 %v714
      %vm766 = vweird.f32 %v760
      %vm767 = vmor %vm765, %vm766
      %v768 = vsel %vm767, %v760, %v764
      %v769 = vand.u32 2147483647, %v714
      %vm770 = vcmp.eq.f32.partialorder %v769, 8.507059e+37
      %v771 = vand.u32 %v714, 2147483648
      %v772 = vor.u32 1.1754944e-38, %v771
      %v773 = vsel %vm770, %v772, %v768
      %v774 = vmul.f32 %v702, %v773
      %vm775 = vcmask 39936
      %v777 = vsel %vm775, %v446, 0
      %v780 = vsel %vm775, %v729, 0
      %782 = vmatpush.xpose.msra.mxu0 0.0
      %783 = vmatpush.xpose.msra.mxu0 0.0
      %784 = vmatpush.xpose.msra.mxu0 0.0
      %785 = vmatpush.xpose.msra.mxu0 0.0
      %786 = vmatpush.xpose.msra.mxu0 0.0
      %787 = vmatpush.xpose.msra.mxu0 0.0
      %788 = vmatpush.xpose.msra.mxu0 0.0
      %789 = vmatpush.xpose.msra.mxu0 0.0
      %790 = vmatpush.xpose.msra.mxu0 0.0
      %791 = vmatpush.xpose.msra.mxu0 0.0
      %792 = vmatpush.xpose.msra.mxu0 0.0
      %793 = vmatpush.xpose.msra.mxu0 0.0
      %794 = vmatpush.xpose.msra.mxu0 0.0
      %795 = vmatpush.xpose.msra.mxu0 0.0
      %796 = vmatpush.xpose.msra.mxu0 0.0
      %797 = vmatpush.xpose.msra.mxu0 %v780
      %798 = vmatmul.f32.gmra.mxu0 %v777
      %v799 = vpop.f32.mrf.mxu0
      %v800 = vadd.f32 0.0, %v799
      %801 = vdwg.mxu0
      %v803 = vsel %vm775, %v449, 0
      %v806 = vsel %vm775, %v744, 0
      %808 = vmatpush.xpose.msra.mxu0 0.0
      %809 = vmatpush.xpose.msra.mxu0 0.0
      %810 = vmatpush.xpose.msra.mxu0 0.0
      %811 = vmatpush.xpose.msra.mxu0 0.0
      %812 = vmatpush.xpose.msra.mxu0 0.0
      %813 = vmatpush.xpose.msra.mxu0 0.0
      %814 = vmatpush.xpose.msra.mxu0 0.0
      %815 = vmatpush.xpose.msra.mxu0 0.0
      %816 = vmatpush.xpose.msra.mxu0 0.0
      %817 = vmatpush.xpose.msra.mxu0 0.0
      %818 = vmatpush.xpose.msra.mxu0 0.0
      %819 = vmatpush.xpose.msra.mxu0 0.0
      %820 = vmatpush.xpose.msra.mxu0 0.0
      %821 = vmatpush.xpose.msra.mxu0 0.0
      %822 = vmatpush.xpose.msra.mxu0 0.0
      %823 = vmatpush.xpose.msra.mxu0 %v806
      %824 = vmatmul.f32.gmra.mxu0 %v803
      %v825 = vpop.f32.mrf.mxu0
      %v826 = vadd.f32 0.0, %v825
      %827 = vdwg.mxu0
      %v829 = vsel %vm775, %v452, 0
      %v832 = vsel %vm775, %v759, 0
      %834 = vmatpush.xpose.msra.mxu0 0.0
      %835 = vmatpush.xpose.msra.mxu0 0.0
      %836 = vmatpush.xpose.msra.mxu0 0.0
      %837 = vmatpush.xpose.msra.mxu0 0.0
      %838 = vmatpush.xpose.msra.mxu0 0.0
      %839 = vmatpush.xpose.msra.mxu0 0.0
      %840 = vmatpush.xpose.msra.mxu0 0.0
      %841 = vmatpush.xpose.msra.mxu0 0.0
      %842 = vmatpush.xpose.msra.mxu0 0.0
      %843 = vmatpush.xpose.msra.mxu0 0.0
      %844 = vmatpush.xpose.msra.mxu0 0.0
      %845 = vmatpush.xpose.msra.mxu0 0.0
      %846 = vmatpush.xpose.msra.mxu0 0.0
      %847 = vmatpush.xpose.msra.mxu0 0.0
      %848 = vmatpush.xpose.msra.mxu0 0.0
      %849 = vmatpush.xpose.msra.mxu0 %v832
      %850 = vmatmul.f32.gmra.mxu0 %v829
      %v851 = vpop.f32.mrf.mxu0
      %v852 = vadd.f32 0.0, %v851
      %853 = vdwg.mxu0
      %v855 = vsel %vm775, %v455, 0
      %v858 = vsel %vm775, %v774, 0
      %860 = vmatpush.xpose.msra.mxu0 0.0
      %861 = vmatpush.xpose.msra.mxu0 0.0
      %862 = vmatpush.xpose.msra.mxu0 0.0
      %863 = vmatpush.xpose.msra.mxu0 0.0
      %864 = vmatpush.xpose.msra.mxu0 0.0
      %865 = vmatpush.xpose.msra.mxu0 0.0
      %866 = vmatpush.xpose.msra.mxu0 0.0
      %867 = vmatpush.xpose.msra.mxu0 0.0
      %868 = vmatpush.xpose.msra.mxu0 0.0
      %869 = vmatpush.xpose.msra.mxu0 0.0
      %870 = vmatpush.xpose.msra.mxu0 0.0
      %871 = vmatpush.xpose.msra.mxu0 0.0
      %872 = vmatpush.xpose.msra.mxu0 0.0
      %873 = vmatpush.xpose.msra.mxu0 0.0
      %874 = vmatpush.xpose.msra.mxu0 0.0
      %875 = vmatpush.xpose.msra.mxu0 %v858
      %876 = vmatmul.f32.gmra.mxu0 %v855
      %v877 = vpop.f32.mrf.mxu0
      %v878 = vadd.f32 0.0, %v877
      %879 = vdwg.mxu0
      %v880 = vld [vmem:[%s2 + $0x60] sm:$0xff]
      %v881 = vld [vmem:[%s2 + $0x68] sm:$0xff]
      %v882 = vld [vmem:[%s2 + $0x70] sm:$0xff]
      %v883 = vld [vmem:[%s2 + $0x78] sm:$0xff]
      %884 = vxpose.xlu0.b32.start [1/16] %v800, 128
      %885 = vxpose.xlu0.b32.cont [2/16] %v826, 128
      %886 = vxpose.xlu0.b32.cont [3/16] %v852, 128
      %887 = vxpose.xlu0.b32.cont [4/16] %v878, 128
      %888 = vxpose.xlu0.b32.cont [5/16] 0.0, 128
      %889 = vxpose.xlu0.b32.cont [6/16] 0.0, 128
      %890 = vxpose.xlu0.b32.cont [7/16] 0.0, 128
      %891 = vxpose.xlu0.b32.cont [8/16] 0.0, 128
      %892 = vxpose.xlu0.b32.cont [9/16] 0.0, 128
      %893 = vxpose.xlu0.b32.cont [10/16] 0.0, 128
      %894 = vxpose.xlu0.b32.cont [11/16] 0.0, 128
      %895 = vxpose.xlu0.b32.cont [12/16] 0.0, 128
      %896 = vxpose.xlu0.b32.cont [13/16] 0.0, 128
      %897 = vxpose.xlu0.b32.cont [14/16] 0.0, 128
      %898 = vxpose.xlu0.b32.cont [15/16] 0.0, 128
      %899 = vxpose.xlu0.b32.end [16/16] 0.0, 128
      %v900 = vpop.trf.xlu0
      %v901 = vpop.trf.xlu0
      %v902 = vpop.trf.xlu0
      %v903 = vpop.trf.xlu0
      %v904 = vpop.trf.xlu0
      %v905 = vpop.trf.xlu0
      %v906 = vpop.trf.xlu0
      %v907 = vpop.trf.xlu0
      %v908 = vpop.trf.xlu0
      %v909 = vpop.trf.xlu0
      %v910 = vpop.trf.xlu0
      %v911 = vpop.trf.xlu0
      %v912 = vpop.trf.xlu0
      %v913 = vpop.trf.xlu0
      %v914 = vpop.trf.xlu0
      %v915 = vpop.trf.xlu0
      %v917 = vsel %vm376, %v900, 0
      %919 = vmatpush.msra.mxu0 0.0
      %920 = vmatpush.msra.mxu0 0.0
      %921 = vmatpush.msra.mxu0 0.0
      %922 = vmatpush.msra.mxu0 0.0
      %923 = vmatpush.msra.mxu0 0.0
      %924 = vmatpush.msra.mxu0 0.0
      %925 = vmatpush.msra.mxu0 0.0
      %926 = vmatpush.msra.mxu0 0.0
      %927 = vmatpush.msra.mxu0 0.0
      %928 = vmatpush.msra.mxu0 0.0
      %929 = vmatpush.msra.mxu0 0.0
      %930 = vmatpush.msra.mxu0 0.0
      %931 = vmatpush.msra.mxu0 %v883
      %932 = vmatpush.msra.mxu0 %v882
      %933 = vmatpush.msra.mxu0 %v881
      %934 = vmatpush.msra.mxu0 %v880
      %935 = vmatmul.f32.gmra.mxu0 %v917
      %v936 = vpop.f32.mrf.mxu0
      %v937 = vadd.f32 0.0, %v936
      %938 = vdwg.mxu0
      %v939 = vadd.f32 %v275, %v937
      %v940 = vld [vmem:[%s2 + $0x124] sm:$0x1]
      %v941 = vperm.slane %v940, 0
      %v942 = vadd.f32 %v939, %v941
      %v943 = vld [vmem:[%s2 + $0x122] sm:$0x1]
      %v944 = vld [vmem:[%s2 + $0x123] sm:$0x1]
      %v945 = vsel %vm242, %v942, 0.0
      %946 = vadd.xlane.f32.xlu0 %v945
      %v947 = vpop.xlane.xlu0 %946
      %v948 = vmul.f32 %v947, %v252
      %v949 = vsub.f32 %v942, %v948
      %v950 = vmul.f32 %v949, %v949
      %v951 = vsel %vm242, %v950, 0.0
      %952 = vadd.xlane.f32.xlu0 %v951
      %v953 = vpop.xlane.xlu0 %952
      %v954 = vmul.f32 %v953, %v252
      %v955 = vadd.f32 %v954, 1e-05
      %v956 = vrsqrt.pop %v955
      %v957 = vmul.f32 %v956, %v955
      %v958 = vmul.f32 %v957, %v956
      %v959 = vmul.f32 0.5, %v958
      %v960 = vsub.f32 1.5, %v959
      %v961 = vmul.f32 %v956, %v960
      %vm962 = vweird.f32 %v955
      %vm963 = vweird.f32 %v956
      %vm964 = vmor %vm962, %vm963
      %v965 = vsel %vm964, %v956, %v961
      %v966 = vmul.f32 %v949, %v965
      %v967 = vperm.slane %v943, 0
      %v968 = vmul.f32 %v966, %v967
      %v969 = vperm.slane %v944, 0
      %v970 = vadd.f32 %v968, %v969
      %v971 = vld [vmem:[%s2 + $0x80] sm:$0xff]
      %v972 = vld [vmem:[%s2 + $0x88] sm:$0xff]
      %v973 = vld [vmem:[%s2 + $0x90] sm:$0xff]
      %v974 = vld [vmem:[%s2 + $0x98] sm:$0xff]
      %v975 = vld [vmem:[%s2 + $0x126] sm:$0x1]
      %v976 = vperm.slane %v975, 0
      %v978 = vsel %vm376, %v970, 0
      %980 = vmatpush.msra.mxu0 0.0
      %981 = vmatpush.msra.mxu0 0.0
      %982 = vmatpush.msra.mxu0 0.0
      %983 = vmatpush.msra.mxu0 0.0
      %984 = vmatpush.msra.mxu0 0.0
      %985 = vmatpush.msra.mxu0 0.0
      %986 = vmatpush.msra.mxu0 0.0
      %987 = vmatpush.msra.mxu0 0.0
      %988 = vmatpush.msra.mxu0 0.0
      %989 = vmatpush.msra.mxu0 0.0
      %990 = vmatpush.msra.mxu0 0.0
      %991 = vmatpush.msra.mxu0 0.0
      %992 = vmatpush.msra.mxu0 %v974
      %993 = vmatpush.msra.mxu0 %v973
      %994 = vmatpush.msra.mxu0 %v972
      %995 = vmatpush.msra.mxu0 %v971
      %996 = vmatmul.f32.gmra.mxu0 %v978
      %v997 = vpop.f32.mrf.mxu0
      %v998 = vadd.f32 %v976, %v997
      %999 = vdwg.mxu0
      %v1000 = vmul.f32 %v998, 0.5
      %v1001 = vmul.f32 %v998, 0.70710677
      %vm1002 = vcmp.ge.f32.partialorder %v1001, 0.0
      %v1003 = vsel %vm1002, 1.0, -1.0
      %v1004 = vand.u32 2147483647, %v1001
      %v1005 = vmul.f32 %v1004, 0.3275911
      %v1006 = vadd.f32 %v1005, 1.0
      %v1007 = vrcp.pop %v1006
      %v1008 = vmul.f32 %v1006, %v1007
      %v1009 = vsub.f32 1.0, %v1008
      %v1010 = vmul.f32 %v1007, %v1009
      %v1011 = vadd.f32 %v1007, %v1010
      %vm1012 = vweird.f32 %v1006
      %vm1013 = vweird.f32 %v1007
      %vm1014 = vmor %vm1012, %vm1013
      %v1015 = vsel %vm1014, %v1007, %v1011
      %v1016 = vand.u32 2147483647, %v1006
      %vm1017 = vcmp.eq.f32.partialorder %v1016, 8.507059e+37
      %v1018 = vand.u32 %v1006, 2147483648
      %v1019 = vor.u32 1.1754944e-38, %v1018
      %v1020 = vsel %vm1017, %v1019, %v1015
      %v1021 = vmul.f32 1.0, %v1020
      %v1022 = vmul.f32 %v1021, 1.0614054
      %v1023 = vadd.f32 %v1022, -1.4531521
      %v1024 = vmul.f32 %v1023, %v1021
      %v1025 = vadd.f32 %v1024, 1.4214138
      %v1026 = vmul.f32 %v1025, %v1021
      %v1027 = vadd.f32 %v1026, -0.28449672
      %v1028 = vmul.f32 %v1027, %v1021
      %v1029 = vadd.f32 %v1028, 0.2548296
      %v1030 = vmul.f32 %v1029, %v1021
      %v1031 = vsub.f32 0.0, %v1004
      %v1032 = vmul.f32 %v1031, %v1004
      %v1033 = vmul.f32 %v1032, 1.442695
      %v1034 = vpow.pop %v1033
      %v1035 = vmul.f32 %v1030, %v1034
      %v1036 = vsub.f32 1.0, %v1035
      %v1037 = vmul.f32 %v1003, %v1036
      %v1038 = vadd.f32 %v1037, 1.0
      %v1039 = vmul.f32 %v1000, %v1038
      %v1040 = vld [vmem:[%s2 + $0xa0] sm:$0xff]
      %v1041 = vld [vmem:[%s2 + $0xa8] sm:$0xff]
      %v1042 = vld [vmem:[%s2 + $0xb0] sm:$0xff]
      %v1043 = vld [vmem:[%s2 + $0xb8] sm:$0xff]
      %v1044 = vld [vmem:[%s2 + $0xc0] sm:$0xff]
      %v1045 = vld [vmem:[%s2 + $0xc8] sm:$0xff]
      %v1046 = vld [vmem:[%s2 + $0xd0] sm:$0xff]
      %v1047 = vld [vmem:[%s2 + $0xd8] sm:$0xff]
      %v1048 = vld [vmem:[%s2 + $0xe0] sm:$0xff]
      %v1049 = vld [vmem:[%s2 + $0xe8] sm:$0xff]
      %v1050 = vld [vmem:[%s2 + $0xf0] sm:$0xff]
      %v1051 = vld [vmem:[%s2 + $0xf8] sm:$0xff]
      %v1052 = vld [vmem:[%s2 + $0x100] sm:$0xff]
      %v1053 = vld [vmem:[%s2 + $0x108] sm:$0xff]
      %v1054 = vld [vmem:[%s2 + $0x110] sm:$0xff]
      %v1055 = vld [vmem:[%s2 + $0x118] sm:$0xff]
      %1056 = vmatpush.msra.mxu0 %v1055
      %1057 = vmatpush.msra.mxu0 %v1054
      %1058 = vmatpush.msra.mxu0 %v1053
      %1059 = vmatpush.msra.mxu0 %v1052
      %1060 = vmatpush.msra.mxu0 %v1051
      %1061 = vmatpush.msra.mxu0 %v1050
      %1062 = vmatpush.msra.mxu0 %v1049
      %1063 = vmatpush.msra.mxu0 %v1048
      %1064 = vmatpush.msra.mxu0 %v1047
      %1065 = vmatpush.msra.mxu0 %v1046
      %1066 = vmatpush.msra.mxu0 %v1045
      %1067 = vmatpush.msra.mxu0 %v1044
      %1068 = vmatpush.msra.mxu0 %v1043
      %1069 = vmatpush.msra.mxu0 %v1042
      %1070 = vmatpush.msra.mxu0 %v1041
      %1071 = vmatpush.msra.mxu0 %v1040
      %1072 = vmatmul.f32.gmra.mxu0 %v1039
      %v1073 = vpop.f32.mrf.mxu0
      %v1074 = vadd.f32 0.0, %v1073
      %1075 = vdwg.mxu0
      %v1076 = vadd.f32 %v942, %v1074
      %v1077 = vld [vmem:[%s2 + $0x125] sm:$0x1]
      %v1078 = vperm.slane %v1077, 0
      %v1079 = vadd.f32 %v1076, %v1078
      %s1080 = scalar_lea.vmem %s2, 296
      %v1081 = vld [vmem:[%s1080 + $0x120] sm:$0x1]
      %v1082 = vld [vmem:[%s1080 + $0x121] sm:$0x1]
      %v1083 = vsel %vm242, %v1079, 0.0
      %1084 = vadd.xlane.f32.xlu0 %v1083
      %v1085 = vpop.xlane.xlu0 %1084
      %v1086 = vmul.f32 %v1085, %v252
      %v1087 = vsub.f32 %v1079, %v1086
      %v1088 = vmul.f32 %v1087, %v1087
      %v1089 = vsel %vm242, %v1088, 0.0
      %1090 = vadd.xlane.f32.xlu0 %v1089
      %v1091 = vpop.xlane.xlu0 %1090
      %v1092 = vmul.f32 %v1091, %v252
      %v1093 = vadd.f32 %v1092, 1e-05
      %v1094 = vrsqrt.pop %v1093
      %v1095 = vmul.f32 %v1094, %v1093
      %v1096 = vmul.f32 %v1095, %v1094
      %v1097 = vmul.f32 0.5, %v1096
      %v1098 = vsub.f32 1.5, %v1097
      %v1099 = vmul.f32 %v1094, %v1098
      %vm1100 = vweird.f32 %v1093
      %vm1101 = vweird.f32 %v1094
      %vm1102 = vmor %vm1100, %vm1101
      %v1103 = vsel %vm1102, %v1094, %v1099
      %v1104 = vmul.f32 %v1087, %v1103
      %v1105 = vperm.slane %v1081, 0
      %v1106 = vmul.f32 %v1104, %v1105
      %v1107 = vperm.slane %v1082, 0
      %v1108 = vadd.f32 %v1106, %v1107
      %v1109 = vld [vmem:[%s1080] sm:$0xff]
      %v1110 = vld [vmem:[%s1080 + $0x8] sm:$0xff]
      %v1111 = vld [vmem:[%s1080 + $0x10] sm:$0xff]
      %v1112 = vld [vmem:[%s1080 + $0x18] sm:$0xff]
      %v1113 = vld [vmem:[%s1080 + $0x20] sm:$0xff]
      %v1114 = vld [vmem:[%s1080 + $0x28] sm:$0xff]
      %v1115 = vld [vmem:[%s1080 + $0x30] sm:$0xff]
      %v1116 = vld [vmem:[%s1080 + $0x38] sm:$0xff]
      %v1117 = vld [vmem:[%s1080 + $0x40] sm:$0xff]
      %v1118 = vld [vmem:[%s1080 + $0x48] sm:$0xff]
      %v1119 = vld [vmem:[%s1080 + $0x50] sm:$0xff]
      %v1120 = vld [vmem:[%s1080 + $0x58] sm:$0xff]
      %1122 = vset.pattern.permute.xlu0 32
      %1123 = vperm.xlu0 %1122, %v1109
      %v1124 = vpop.permute.xlu0 %1123
      %1127 = vset.pattern.permute.xlu0 32
      %1128 = vperm.xlu0 %1127, %v1110
      %v1129 = vpop.permute.xlu0 %1128
      %1132 = vset.pattern.permute.xlu0 32
      %1133 = vperm.xlu0 %1132, %v1111
      %v1134 = vpop.permute.xlu0 %1133
      %1137 = vset.pattern.permute.xlu0 32
      %1138 = vperm.xlu0 %1137, %v1112
      %v1139 = vpop.permute.xlu0 %1138
      %1142 = vset.pattern.permute.xlu0 32
      %1143 = vperm.xlu0 %1142, %v1113
      %v1144 = vpop.permute.xlu0 %1143
      %1147 = vset.pattern.permute.xlu0 32
      %1148 = vperm.xlu0 %1147, %v1114
      %v1149 = vpop.permute.xlu0 %1148
      %1152 = vset.pattern.permute.xlu0 32
      %1153 = vperm.xlu0 %1152, %v1115
      %v1154 = vpop.permute.xlu0 %1153
      %1157 = vset.pattern.permute.xlu0 32
      %1158 = vperm.xlu0 %1157, %v1116
      %v1159 = vpop.permute.xlu0 %1158
      %1162 = vset.pattern.permute.xlu0 32
      %1163 = vperm.xlu0 %1162, %v1117
      %v1164 = vpop.permute.xlu0 %1163
      %1167 = vset.pattern.permute.xlu0 32
      %1168 = vperm.xlu0 %1167, %v1118
      %v1169 = vpop.permute.xlu0 %1168
      %1172 = vset.pattern.permute.xlu0 32
      %1173 = vperm.xlu0 %1172, %v1119
      %v1174 = vpop.permute.xlu0 %1173
      %1177 = vset.pattern.permute.xlu0 32
      %1178 = vperm.xlu0 %1177, %v1120
      %v1179 = vpop.permute.xlu0 %1178
      %v1181 = vsel %vm376, %v1109, 0
      %v1183 = vsel %vm376, %v1110, 0
      %v1185 = vsel %vm376, %v1111, 0
      %v1187 = vsel %vm376, %v1112, 0
      %v1189 = vsel %vm376, %v1113, 0
      %v1191 = vsel %vm376, %v1114, 0
      %v1193 = vsel %vm376, %v1115, 0
      %v1195 = vsel %vm376, %v1116, 0
      %v1197 = vsel %vm376, %v1117, 0
      %v1199 = vsel %vm376, %v1118, 0
      %v1201 = vsel %vm376, %v1119, 0
      %v1203 = vsel %vm376, %v1120, 0
      %v1206 = vsel %vm376, %v1108, 0
      %1208 = vmatpush.xpose.msra.mxu0 0.0
      %1209 = vmatpush.xpose.msra.mxu0 0.0
      %1210 = vmatpush.xpose.msra.mxu0 0.0
      %1211 = vmatpush.xpose.msra.mxu0 0.0
      %1212 = vmatpush.xpose.msra.mxu0 0.0
      %1213 = vmatpush.xpose.msra.mxu0 0.0
      %1214 = vmatpush.xpose.msra.mxu0 0.0
      %1215 = vmatpush.xpose.msra.mxu0 0.0
      %1216 = vmatpush.xpose.msra.mxu0 0.0
      %1217 = vmatpush.xpose.msra.mxu0 0.0
      %1218 = vmatpush.xpose.msra.mxu0 0.0
      %1219 = vmatpush.xpose.msra.mxu0 0.0
      %1220 = vmatpush.xpose.msra.mxu0 0.0
      %1221 = vmatpush.xpose.msra.mxu0 0.0
      %1222 = vmatpush.xpose.msra.mxu0 0.0
      %1223 = vmatpush.xpose.msra.mxu0 %v1206
      %1224 = vmatmul.f32.gmra.mxu0 %v1181
      %v1225 = vpop.f32.mrf.mxu0
      %v1226 = vadd.f32 %v1124, %v1225
      %1227 = vmatmul.f32.gmra.mxu0 %v1183
      %v1228 = vpop.f32.mrf.mxu0
      %v1229 = vadd.f32 %v1129, %v1228
      %1230 = vmatmul.f32.gmra.mxu0 %v1185
      %v1231 = vpop.f32.mrf.mxu0
      %v1232 = vadd.f32 %v1134, %v1231
      %1233 = vmatmul.f32.gmra.mxu0 %v1187
      %v1234 = vpop.f32.mrf.mxu0
      %v1235 = vadd.f32 %v1139, %v1234
      %1236 = vmatmul.f32.gmra.mxu0 %v1189
      %v1237 = vpop.f32.mrf.mxu0
      %v1238 = vadd.f32 %v1144, %v1237
      %1239 = vmatmul.f32.gmra.mxu0 %v1191
      %v1240 = vpop.f32.mrf.mxu0
      %v1241 = vadd.f32 %v1149, %v1240
      %1242 = vmatmul.f32.gmra.mxu0 %v1193
      %v1243 = vpop.f32.mrf.mxu0
      %v1244 = vadd.f32 %v1154, %v1243
      %1245 = vmatmul.f32.gmra.mxu0 %v1195
      %v1246 = vpop.f32.mrf.mxu0
      %v1247 = vadd.f32 %v1159, %v1246
      %1248 = vmatmul.f32.gmra.mxu0 %v1197
      %v1249 = vpop.f32.mrf.mxu0
      %v1250 = vadd.f32 %v1164, %v1249
      %1251 = vmatmul.f32.gmra.mxu0 %v1199
      %v1252 = vpop.f32.mrf.mxu0
      %v1253 = vadd.f32 %v1169, %v1252
      %1254 = vmatmul.f32.gmra.mxu0 %v1201
      %v1255 = vpop.f32.mrf.mxu0
      %v1256 = vadd.f32 %v1174, %v1255
      %1257 = vmatmul.f32.gmra.mxu0 %v1203
      %v1258 = vpop.f32.mrf.mxu0
      %v1259 = vadd.f32 %v1179, %v1258
      %1260 = vdwg.mxu0
      %1261 = vxpose.xlu0.b32.start [1/16] %v1226, 128
      %1262 = vxpose.xlu0.b32.cont [2/16] 0.0, 128
      %1263 = vxpose.xlu0.b32.cont [3/16] 0.0, 128
      %1264 = vxpose.xlu0.b32.cont [4/16] 0.0, 128
      %1265 = vxpose.xlu0.b32.cont [5/16] 0.0, 128
      %1266 = vxpose.xlu0.b32.cont [6/16] 0.0, 128
      %1267 = vxpose.xlu0.b32.cont [7/16] 0.0, 128
      %1268 = vxpose.xlu0.b32.cont [8/16] 0.0, 128
      %1269 = vxpose.xlu0.b32.cont [9/16] 0.0, 128
      %1270 = vxpose.xlu0.b32.cont [10/16] 0.0, 128
      %1271 = vxpose.xlu0.b32.cont [11/16] 0.0, 128
      %1272 = vxpose.xlu0.b32.cont [12/16] 0.0, 128
      %1273 = vxpose.xlu0.b32.cont [13/16] 0.0, 128
      %1274 = vxpose.xlu0.b32.cont [14/16] 0.0, 128
      %1275 = vxpose.xlu0.b32.cont [15/16] 0.0, 128
      %1276 = vxpose.xlu0.b32.end [16/16] 0.0, 128
      %v1277 = vpop.trf.xlu0
      %v1278 = vpop.trf.xlu0
      %v1279 = vpop.trf.xlu0
      %v1280 = vpop.trf.xlu0
      %v1281 = vpop.trf.xlu0
      %v1282 = vpop.trf.xlu0
      %v1283 = vpop.trf.xlu0
      %v1284 = vpop.trf.xlu0
      %v1285 = vpop.trf.xlu0
      %v1286 = vpop.trf.xlu0
      %v1287 = vpop.trf.xlu0
      %v1288 = vpop.trf.xlu0
      %v1289 = vpop.trf.xlu0
      %v1290 = vpop.trf.xlu0
      %v1291 = vpop.trf.xlu0
      %v1292 = vpop.trf.xlu0
      %v1294 = vsel %vm489, %v1277, 0
      %1296 = vmatpush.msra.mxu0 0.0
      %1297 = vmatpush.msra.mxu0 0.0
      %1298 = vmatpush.msra.mxu0 0.0
      %1299 = vmatpush.msra.mxu0 0.0
      %1300 = vmatpush.msra.mxu0 0.0
      %1301 = vmatpush.msra.mxu0 0.0
      %1302 = vmatpush.msra.mxu0 0.0
      %1303 = vmatpush.msra.mxu0 0.0
      %1304 = vmatpush.msra.mxu0 0.0
      %1305 = vmatpush.msra.mxu0 0.0
      %1306 = vmatpush.msra.mxu0 0.0
      %1307 = vmatpush.msra.mxu0 0.0
      %1308 = vmatpush.msra.mxu0 0.0
      %1309 = vmatpush.msra.mxu0 0.0
      %1310 = vmatpush.msra.mxu0 0.0
      %1311 = vmatpush.msra.mxu0 %v1238
      %1312 = vmatmul.f32.gmra.mxu0 %v1294
      %v1313 = vpop.f32.mrf.mxu0
      %v1314 = vadd.f32 0.0, %v1313
      %1315 = vdwg.mxu0
      %1316 = vxpose.xlu0.b32.start [1/16] %v1229, 128
      %1317 = vxpose.xlu0.b32.cont [2/16] 0.0, 128
      %1318 = vxpose.xlu0.b32.cont [3/16] 0.0, 128
      %1319 = vxpose.xlu0.b32.cont [4/16] 0.0, 128
      %1320 = vxpose.xlu0.b32.cont [5/16] 0.0, 128
      %1321 = vxpose.xlu0.b32.cont [6/16] 0.0, 128
      %1322 = vxpose.xlu0.b32.cont [7/16] 0.0, 128
      %1323 = vxpose.xlu0.b32.cont [8/16] 0.0, 128
      %1324 = vxpose.xlu0.b32.cont [9/16] 0.0, 128
      %1325 = vxpose.xlu0.b32.cont [10/16] 0.0, 128
      %1326 = vxpose.xlu0.b32.cont [11/16] 0.0, 128
      %1327 = vxpose.xlu0.b32.cont [12/16] 0.0, 128
      %1328 = vxpose.xlu0.b32.cont [13/16] 0.0, 128
      %1329 = vxpose.xlu0.b32.cont [14/16] 0.0, 128
      %1330 = vxpose.xlu0.b32.cont [15/16] 0.0, 128
      %1331 = vxpose.xlu0.b32.end [16/16] 0.0, 128
      %v1332 = vpop.trf.xlu0
      %v1333 = vpop.trf.xlu0
      %v1334 = vpop.trf.xlu0
      %v1335 = vpop.trf.xlu0
      %v1336 = vpop.trf.xlu0
      %v1337 = vpop.trf.xlu0
      %v1338 = vpop.trf.xlu0
      %v1339 = vpop.trf.xlu0
      %v1340 = vpop.trf.xlu0
      %v1341 = vpop.trf.xlu0
      %v1342 = vpop.trf.xlu0
      %v1343 = vpop.trf.xlu0
      %v1344 = vpop.trf.xlu0
      %v1345 = vpop.trf.xlu0
      %v1346 = vpop.trf.xlu0
      %v1347 = vpop.trf.xlu0
      %v1349 = vsel %vm489, %v1332, 0
      %1351 = vmatpush.msra.mxu0 0.0
      %1352 = vmatpush.msra.mxu0 0.0
      %1353 = vmatpush.msra.mxu0 0.0
      %1354 = vmatpush.msra.mxu0 0.0
      %1355 = vmatpush.msra.mxu0 0.0
      %1356 = vmatpush.msra.mxu0 0.0
      %1357 = vmatpush.msra.mxu0 0.0
      %1358 = vmatpush.msra.mxu0 0.0
      %1359 = vmatpush.msra.mxu0 0.0
      %1360 = vmatpush.msra.mxu0 0.0
      %1361 = vmatpush.msra.mxu0 0.0
      %1362 = vmatpush.msra.mxu0 0.0
      %1363 = vmatpush.msra.mxu0 0.0
      %1364 = vmatpush.msra.mxu0 0.0
      %1365 = vmatpush.msra.mxu0 0.0
      %1366 = vmatpush.msra.mxu0 %v1241
      %1367 = vmatmul.f32.gmra.mxu0 %v1349
      %v1368 = vpop.f32.mrf.mxu0
      %v1369 = vadd.f32 0.0, %v1368
      %1370 = vdwg.mxu0
      %1371 = vxpose.xlu0.b32.start [1/16] %v1232, 128
      %1372 = vxpose.xlu0.b32.cont [2/16] 0.0, 128
      %1373 = vxpose.xlu0.b32.cont [3/16] 0.0, 128
      %1374 = vxpose.xlu0.b32.cont [4/16] 0.0, 128
      %1375 = vxpose.xlu0.b32.cont [5/16] 0.0, 128
      %1376 = vxpose.xlu0.b32.cont [6/16] 0.0, 128
      %1377 = vxpose.xlu0.b32.cont [7/16] 0.0, 128
      %1378 = vxpose.xlu0.b32.cont [8/16] 0.0, 128
      %1379 = vxpose.xlu0.b32.cont [9/16] 0.0, 128
      %1380 = vxpose.xlu0.b32.cont [10/16] 0.0, 128
      %1381 = vxpose.xlu0.b32.cont [11/16] 0.0, 128
      %1382 = vxpose.xlu0.b32.cont [12/16] 0.0, 128
      %1383 = vxpose.xlu0.b32.cont [13/16] 0.0, 128
      %1384 = vxpose.xlu0.b32.cont [14/16] 0.0, 128
      %1385 = vxpose.xlu0.b32.cont [15/16] 0.0, 128
      %1386 = vxpose.xlu0.b32.end [16/16] 0.0, 128
      %v1387 = vpop.trf.xlu0
      %v1388 = vpop.trf.xlu0
      %v1389 = vpop.trf.xlu0
      %v1390 = vpop.trf.xlu0
      %v1391 = vpop.trf.xlu0
      %v1392 = vpop.trf.xlu0
      %v1393 = vpop.trf.xlu0
      %v1394 = vpop.trf.xlu0
      %v1395 = vpop.trf.xlu0
      %v1396 = vpop.trf.xlu0
      %v1397 = vpop.trf.xlu0
      %v1398 = vpop.trf.xlu0
      %v1399 = vpop.trf.xlu0
      %v1400 = vpop.trf.xlu0
      %v1401 = vpop.trf.xlu0
      %v1402 = vpop.trf.xlu0
      %v1404 = vsel %vm489, %v1387, 0
      %1406 = vmatpush.msra.mxu0 0.0
      %1407 = vmatpush.msra.mxu0 0.0
      %1408 = vmatpush.msra.mxu0 0.0
      %1409 = vmatpush.msra.mxu0 0.0
      %1410 = vmatpush.msra.mxu0 0.0
      %1411 = vmatpush.msra.mxu0 0.0
      %1412 = vmatpush.msra.mxu0 0.0
      %1413 = vmatpush.msra.mxu0 0.0
      %1414 = vmatpush.msra.mxu0 0.0
      %1415 = vmatpush.msra.mxu0 0.0
      %1416 = vmatpush.msra.mxu0 0.0
      %1417 = vmatpush.msra.mxu0 0.0
      %1418 = vmatpush.msra.mxu0 0.0
      %1419 = vmatpush.msra.mxu0 0.0
      %1420 = vmatpush.msra.mxu0 0.0
      %1421 = vmatpush.msra.mxu0 %v1244
      %1422 = vmatmul.f32.gmra.mxu0 %v1404
      %v1423 = vpop.f32.mrf.mxu0
      %v1424 = vadd.f32 0.0, %v1423
      %1425 = vdwg.mxu0
      %1426 = vxpose.xlu0.b32.start [1/16] %v1235, 128
      %1427 = vxpose.xlu0.b32.cont [2/16] 0.0, 128
      %1428 = vxpose.xlu0.b32.cont [3/16] 0.0, 128
      %1429 = vxpose.xlu0.b32.cont [4/16] 0.0, 128
      %1430 = vxpose.xlu0.b32.cont [5/16] 0.0, 128
      %1431 = vxpose.xlu0.b32.cont [6/16] 0.0, 128
      %1432 = vxpose.xlu0.b32.cont [7/16] 0.0, 128
      %1433 = vxpose.xlu0.b32.cont [8/16] 0.0, 128
      %1434 = vxpose.xlu0.b32.cont [9/16] 0.0, 128
      %1435 = vxpose.xlu0.b32.cont [10/16] 0.0, 128
      %1436 = vxpose.xlu0.b32.cont [11/16] 0.0, 128
      %1437 = vxpose.xlu0.b32.cont [12/16] 0.0, 128
      %1438 = vxpose.xlu0.b32.cont [13/16] 0.0, 128
      %1439 = vxpose.xlu0.b32.cont [14/16] 0.0, 128
      %1440 = vxpose.xlu0.b32.cont [15/16] 0.0, 128
      %1441 = vxpose.xlu0.b32.end [16/16] 0.0, 128
      %v1442 = vpop.trf.xlu0
      %v1443 = vpop.trf.xlu0
      %v1444 = vpop.trf.xlu0
      %v1445 = vpop.trf.xlu0
      %v1446 = vpop.trf.xlu0
      %v1447 = vpop.trf.xlu0
      %v1448 = vpop.trf.xlu0
      %v1449 = vpop.trf.xlu0
      %v1450 = vpop.trf.xlu0
      %v1451 = vpop.trf.xlu0
      %v1452 = vpop.trf.xlu0
      %v1453 = vpop.trf.xlu0
      %v1454 = vpop.trf.xlu0
      %v1455 = vpop.trf.xlu0
      %v1456 = vpop.trf.xlu0
      %v1457 = vpop.trf.xlu0
      %v1459 = vsel %vm489, %v1442, 0
      %1461 = vmatpush.msra.mxu0 0.0
      %1462 = vmatpush.msra.mxu0 0.0
      %1463 = vmatpush.msra.mxu0 0.0
      %1464 = vmatpush.msra.mxu0 0.0
      %1465 = vmatpush.msra.mxu0 0.0
      %1466 = vmatpush.msra.mxu0 0.0
      %1467 = vmatpush.msra.mxu0 0.0
      %1468 = vmatpush.msra.mxu0 0.0
      %1469 = vmatpush.msra.mxu0 0.0
      %1470 = vmatpush.msra.mxu0 0.0
      %1471 = vmatpush.msra.mxu0 0.0
      %1472 = vmatpush.msra.mxu0 0.0
      %1473 = vmatpush.msra.mxu0 0.0
      %1474 = vmatpush.msra.mxu0 0.0
      %1475 = vmatpush.msra.mxu0 0.0
      %1476 = vmatpush.msra.mxu0 %v1247
      %1477 = vmatmul.f32.gmra.mxu0 %v1459
      %v1478 = vpop.f32.mrf.mxu0
      %v1479 = vadd.f32 0.0, %v1478
      %1480 = vdwg.mxu0
      %v1481 = vsel %vm678, %v1314, -inf
      %1482 = vmax.xlane.f32.xlu0 %v1481
      %v1483 = vpop.xlane.xlu0 %1482
      %v1484 = vsel %vm678, %v1369, -inf
      %1485 = vmax.xlane.f32.xlu0 %v1484
      %v1486 = vpop.xlane.xlu0 %1485
      %v1487 = vsel %vm678, %v1424, -inf
      %1488 = vmax.xlane.f32.xlu0 %v1487
      %v1489 = vpop.xlane.xlu0 %1488
      %v1490 = vsel %vm678, %v1479, -inf
      %1491 = vmax.xlane.f32.xlu0 %v1490
      %v1492 = vpop.xlane.xlu0 %1491
      %v1493 = vsub.f32 %v1314, %v1483
      %v1494 = vsub.f32 %v1369, %v1486
      %v1495 = vsub.f32 %v1424, %v1489
      %v1496 = vsub.f32 %v1479, %v1492
      %v1497 = vmul.f32 %v1493, 1.442695
      %v1498 = vpow.pop %v1497
      %v1499 = vmul.f32 %v1494, 1.442695
      %v1500 = vpow.pop %v1499
      %v1501 = vmul.f32 %v1495, 1.442695
      %v1502 = vpow.pop %v1501
      %v1503 = vmul.f32 %v1496, 1.442695
      %v1504 = vpow.pop %v1503
      %v1505 = vsel %vm678, %v1498, 0.0
      %1506 = vadd.xlane.f32.xlu0 %v1505
      %v1507 = vpop.xlane.xlu0 %1506
      %v1508 = vsel %vm678, %v1500, 0.0
      %1509 = vadd.xlane.f32.xlu0 %v1508
      %v1510 = vpop.xlane.xlu0 %1509
      %v1511 = vsel %vm678, %v1502, 0.0
      %1512 = vadd.xlane.f32.xlu0 %v1511
      %v1513 = vpop.xlane.xlu0 %1512
      %v1514 = vsel %vm678, %v1504, 0.0
      %1515 = vadd.xlane.f32.xlu0 %v1514
      %v1516 = vpop.xlane.xlu0 %1515
      %v1517 = vrcp.pop %v1507
      %v1518 = vmul.f32 %v1507, %v1517
      %v1519 = vsub.f32 1.0, %v1518
      %v1520 = vmul.f32 %v1517, %v1519
      %v1521 = vadd.f32 %v1517, %v1520
      %vm1522 = vweird.f32 %v1507
      %vm1523 = vweird.f32 %v1517
      %vm1524 = vmor %vm1522, %vm1523
      %v1525 = vsel %vm1524, %v1517, %v1521
      %v1526 = vand.u32 2147483647, %v1507
      %vm1527 = vcmp.eq.f32.partialorder %v1526, 8.507059e+37
      %v1528 = vand.u32 %v1507, 2147483648
      %v1529 = vor.u32 1.1754944e-38, %v1528
      %v1530 = vsel %vm1527, %v1529, %v1525
      %v1531 = vmul.f32 %v1498, %v1530
      %v1532 = vrcp.pop %v1510
      %v1533 = vmul.f32 %v1510, %v1532
      %v1534 = vsub.f32 1.0, %v1533
      %v1535 = vmul.f32 %v1532, %v1534
      %v1536 = vadd.f32 %v1532, %v1535
      %vm1537 = vweird.f32 %v1510
      %vm1538 = vweird.f32 %v1532
      %vm1539 = vmor %vm1537, %vm1538
      %v1540 = vsel %vm1539, %v1532, %v1536
      %v1541 = vand.u32 2147483647, %v1510
      %vm1542 = vcmp.eq.f32.partialorder %v1541, 8.507059e+37
      %v1543 = vand.u32 %v1510, 2147483648
      %v1544 = vor.u32 1.1754944e-38, %v1543
      %v1545 = vsel %vm1542, %v1544, %v1540
      %v1546 = vmul.f32 %v1500, %v1545
      %v1547 = vrcp.pop %v1513
      %v1548 = vmul.f32 %v1513, %v1547
      %v1549 = vsub.f32 1.0, %v1548
      %v1550 = vmul.f32 %v1547, %v1549
      %v1551 = vadd.f32 %v1547, %v1550
      %vm1552 = vweird.f32 %v1513
      %vm1553 = vweird.f32 %v1547
      %vm1554 = vmor %vm1552, %vm1553
      %v1555 = vsel %vm1554, %v1547, %v1551
      %v1556 = vand.u32 2147483647, %v1513
      %vm1557 = vcmp.eq.f32.partialorder %v1556, 8.507059e+37
      %v1558 = vand.u32 %v1513, 2147483648
      %v1559 = vor.u32 1.1754944e-38, %v1558
      %v1560 = vsel %vm1557, %v1559, %v1555
      %v1561 = vmul.f32 %v1502, %v1560
      %v1562 = vrcp.pop %v1516
      %v1563 = vmul.f32 %v1516, %v1562
      %v1564 = vsub.f32 1.0, %v1563
      %v1565 = vmul.f32 %v1562, %v1564
      %v1566 = vadd.f32 %v1562, %v1565
      %vm1567 = vweird.f32 %v1516
      %vm1568 = vweird.f32 %v1562
      %vm1569 = vmor %vm1567, %vm1568
      %v1570 = vsel %vm1569, %v1562, %v1566
      %v1571 = vand.u32 2147483647, %v1516
      %vm1572 = vcmp.eq.f32.partialorder %v1571, 8.507059e+37
      %v1573 = vand.u32 %v1516, 2147483648
      %v1574 = vor.u32 1.1754944e-38, %v1573
      %v1575 = vsel %vm1572, %v1574, %v1570
      %v1576 = vmul.f32 %v1504, %v1575
      %v1578 = vsel %vm775, %v1250, 0
      %v1581 = vsel %vm775, %v1531, 0
      %1583 = vmatpush.xpose.msra.mxu0 0.0
      %1584 = vmatpush.xpose.msra.mxu0 0.0
      %1585 = vmatpush.xpose.msra.mxu0 0.0
      %1586 = vmatpush.xpose.msra.mxu0 0.0
      %1587 = vmatpush.xpose.msra.mxu0 0.0
      %1588 = vmatpush.xpose.msra.mxu0 0.0
      %1589 = vmatpush.xpose.msra.mxu0 0.0
      %1590 = vmatpush.xpose.msra.mxu0 0.0
      %1591 = vmatpush.xpose.msra.mxu0 0.0
      %1592 = vmatpush.xpose.msra.mxu0 0.0
      %1593 = vmatpush.xpose.msra.mxu0 0.0
      %1594 = vmatpush.xpose.msra.mxu0 0.0
      %1595 = vmatpush.xpose.msra.mxu0 0.0
      %1596 = vmatpush.xpose.msra.mxu0 0.0
      %1597 = vmatpush.xpose.msra.mxu0 0.0
      %1598 = vmatpush.xpose.msra.mxu0 %v1581
      %1599 = vmatmul.f32.gmra.mxu0 %v1578
      %v1600 = vpop.f32.mrf.mxu0
      %v1601 = vadd.f32 0.0, %v1600
      %1602 = vdwg.mxu0
      %v1604 = vsel %vm775, %v1253, 0
      %v1607 = vsel %vm775, %v1546, 0
      %1609 = vmatpush.xpose.msra.mxu0 0.0
      %1610 = vmatpush.xpose.msra.mxu0 0.0
      %1611 = vmatpush.xpose.msra.mxu0 0.0
      %1612 = vmatpush.xpose.msra.mxu0 0.0
      %1613 = vmatpush.xpose.msra.mxu0 0.0
      %1614 = vmatpush.xpose.msra.mxu0 0.0
      %1615 = vmatpush.xpose.msra.mxu0 0.0
      %1616 = vmatpush.xpose.msra.mxu0 0.0
      %1617 = vmatpush.xpose.msra.mxu0 0.0
      %1618 = vmatpush.xpose.msra.mxu0 0.0
      %1619 = vmatpush.xpose.msra.mxu0 0.0
      %1620 = vmatpush.xpose.msra.mxu0 0.0
      %1621 = vmatpush.xpose.msra.mxu0 0.0
      %1622 = vmatpush.xpose.msra.mxu0 0.0
      %1623 = vmatpush.xpose.msra.mxu0 0.0
      %1624 = vmatpush.xpose.msra.mxu0 %v1607
      %1625 = vmatmul.f32.gmra.mxu0 %v1604
      %v1626 = vpop.f32.mrf.mxu0
      %v1627 = vadd.f32 0.0, %v1626
      %1628 = vdwg.mxu0
      %v1630 = vsel %vm775, %v1256, 0
      %v1633 = vsel %vm775, %v1561, 0
      %1635 = vmatpush.xpose.msra.mxu0 0.0
      %1636 = vmatpush.xpose.msra.mxu0 0.0
      %1637 = vmatpush.xpose.msra.mxu0 0.0
      %1638 = vmatpush.xpose.msra.mxu0 0.0
      %1639 = vmatpush.xpose.msra.mxu0 0.0
      %1640 = vmatpush.xpose.msra.mxu0 0.0
      %1641 = vmatpush.xpose.msra.mxu0 0.0
      %1642 = vmatpush.xpose.msra.mxu0 0.0
      %1643 = vmatpush.xpose.msra.mxu0 0.0
      %1644 = vmatpush.xpose.msra.mxu0 0.0
      %1645 = vmatpush.xpose.msra.mxu0 0.0
      %1646 = vmatpush.xpose.msra.mxu0 0.0
      %1647 = vmatpush.xpose.msra.mxu0 0.0
      %1648 = vmatpush.xpose.msra.mxu0 0.0
      %1649 = vmatpush.xpose.msra.mxu0 0.0
      %1650 = vmatpush.xpose.msra.mxu0 %v1633
      %1651 = vmatmul.f32.gmra.mxu0 %v1630
      %v1652 = vpop.f32.mrf.mxu0
      %v1653 = vadd.f32 0.0, %v1652
      %1654 = vdwg.mxu0
      %v1656 = vsel %vm775, %v1259, 0
      %v1659 = vsel %vm775, %v1576, 0
      %1661 = vmatpush.xpose.msra.mxu0 0.0
      %1662 = vmatpush.xpose.msra.mxu0 0.0
      %1663 = vmatpush.xpose.msra.mxu0 0.0
      %1664 = vmatpush.xpose.msra.mxu0 0.0
      %1665 = vmatpush.xpose.msra.mxu0 0.0
      %1666 = vmatpush.xpose.msra.mxu0 0.0
      %1667 = vmatpush.xpose.msra.mxu0 0.0
      %1668 = vmatpush.xpose.msra.mxu0 0.0
      %1669 = vmatpush.xpose.msra.mxu0 0.0
      %1670 = vmatpush.xpose.msra.mxu0 0.0
      %1671 = vmatpush.xpose.msra.mxu0 0.0
      %1672 = vmatpush.xpose.msra.mxu0 0.0
      %1673 = vmatpush.xpose.msra.mxu0 0.0
      %1674 = vmatpush.xpose.msra.mxu0 0.0
      %1675 = vmatpush.xpose.msra.mxu0 0.0
      %1676 = vmatpush.xpose.msra.mxu0 %v1659
      %1677 = vmatmul.f32.gmra.mxu0 %v1656
      %v1678 = vpop.f32.mrf.mxu0
      %v1679 = vadd.f32 0.0, %v1678
      %1680 = vdwg.mxu0
      %v1681 = vld [vmem:[%s1080 + $0x60] sm:$0xff]
      %v1682 = vld [vmem:[%s1080 + $0x68] sm:$0xff]
      %v1683 = vld [vmem:[%s1080 + $0x70] sm:$0xff]
      %v1684 = vld [vmem:[%s1080 + $0x78] sm:$0xff]
      %1685 = vxpose.xlu0.b32.start [1/16] %v1601, 128
      %1686 = vxpose.xlu0.b32.cont [2/16] %v1627, 128
      %1687 = vxpose.xlu0.b32.cont [3/16] %v1653, 128
      %1688 = vxpose.xlu0.b32.cont [4/16] %v1679, 128
      %1689 = vxpose.xlu0.b32.cont [5/16] 0.0, 128
      %1690 = vxpose.xlu0.b32.cont [6/16] 0.0, 128
      %1691 = vxpose.xlu0.b32.cont [7/16] 0.0, 128
      %1692 = vxpose.xlu0.b32.cont [8/16] 0.0, 128
      %1693 = vxpose.xlu0.b32.cont [9/16] 0.0, 128
      %1694 = vxpose.xlu0.b32.cont [10/16] 0.0, 128
      %1695 = vxpose.xlu0.b32.cont [11/16] 0.0, 128
      %1696 = vxpose.xlu0.b32.cont [12/16] 0.0, 128
      %1697 = vxpose.xlu0.b32.cont [13/16] 0.0, 128
      %1698 = vxpose.xlu0.b32.cont [14/16] 0.0, 128
      %1699 = vxpose.xlu0.b32.cont [15/16] 0.0, 128
      %1700 = vxpose.xlu0.b32.end [16/16] 0.0, 128
      %v1701 = vpop.trf.xlu0
      %v1702 = vpop.trf.xlu0
      %v1703 = vpop.trf.xlu0
      %v1704 = vpop.trf.xlu0
      %v1705 = vpop.trf.xlu0
      %v1706 = vpop.trf.xlu0
      %v1707 = vpop.trf.xlu0
      %v1708 = vpop.trf.xlu0
      %v1709 = vpop.trf.xlu0
      %v1710 = vpop.trf.xlu0
      %v1711 = vpop.trf.xlu0
      %v1712 = vpop.trf.xlu0
      %v1713 = vpop.trf.xlu0
      %v1714 = vpop.trf.xlu0
      %v1715 = vpop.trf.xlu0
      %v1716 = vpop.trf.xlu0
      %v1718 = vsel %vm376, %v1701, 0
      %1720 = vmatpush.msra.mxu0 0.0
      %1721 = vmatpush.msra.mxu0 0.0
      %1722 = vmatpush.msra.mxu0 0.0
      %1723 = vmatpush.msra.mxu0 0.0
      %1724 = vmatpush.msra.mxu0 0.0
      %1725 = vmatpush.msra.mxu0 0.0
      %1726 = vmatpush.msra.mxu0 0.0
      %1727 = vmatpush.msra.mxu0 0.0
      %1728 = vmatpush.msra.mxu0 0.0
      %1729 = vmatpush.msra.mxu0 0.0
      %1730 = vmatpush.msra.mxu0 0.0
      %1731 = vmatpush.msra.mxu0 0.0
      %1732 = vmatpush.msra.mxu0 %v1684
      %1733 = vmatpush.msra.mxu0 %v1683
      %1734 = vmatpush.msra.mxu0 %v1682
      %1735 = vmatpush.msra.mxu0 %v1681
      %1736 = vmatmul.f32.gmra.mxu0 %v1718
      %v1737 = vpop.f32.mrf.mxu0
      %v1738 = vadd.f32 0.0, %v1737
      %1739 = vdwg.mxu0
      %v1740 = vadd.f32 %v1079, %v1738
      %v1741 = vld [vmem:[%s1080 + $0x124] sm:$0x1]
      %v1742 = vperm.slane %v1741, 0
      %v1743 = vadd.f32 %v1740, %v1742
      %v1744 = vld [vmem:[%s1080 + $0x122] sm:$0x1]
      %v1745 = vld [vmem:[%s1080 + $0x123] sm:$0x1]
      %v1746 = vsel %vm242, %v1743, 0.0
      %1747 = vadd.xlane.f32.xlu0 %v1746
      %v1748 = vpop.xlane.xlu0 %1747
      %v1749 = vmul.f32 %v1748, %v252
      %v1750 = vsub.f32 %v1743, %v1749
      %v1751 = vmul.f32 %v1750, %v1750
      %v1752 = vsel %vm242, %v1751, 0.0
      %1753 = vadd.xlane.f32.xlu0 %v1752
      %v1754 = vpop.xlane.xlu0 %1753
      %v1755 = vmul.f32 %v1754, %v252
      %v1756 = vadd.f32 %v1755, 1e-05
      %v1757 = vrsqrt.pop %v1756
      %v1758 = vmul.f32 %v1757, %v1756
      %v1759 = vmul.f32 %v1758, %v1757
      %v1760 = vmul.f32 0.5, %v1759
      %v1761 = vsub.f32 1.5, %v1760
      %v1762 = vmul.f32 %v1757, %v1761
      %vm1763 = vweird.f32 %v1756
      %vm1764 = vweird.f32 %v1757
      %vm1765 = vmor %vm1763, %vm1764
      %v1766 = vsel %vm1765, %v1757, %v1762
      %v1767 = vmul.f32 %v1750, %v1766
      %v1768 = vperm.slane %v1744, 0
      %v1769 = vmul.f32 %v1767, %v1768
      %v1770 = vperm.slane %v1745, 0
      %v1771 = vadd.f32 %v1769, %v1770
      %v1772 = vld [vmem:[%s1080 + $0x80] sm:$0xff]
      %v1773 = vld [vmem:[%s1080 + $0x88] sm:$0xff]
      %v1774 = vld [vmem:[%s1080 + $0x90] sm:$0xff]
      %v1775 = vld [vmem:[%s1080 + $0x98] sm:$0xff]
      %v1776 = vld [vmem:[%s1080 + $0x126] sm:$0x1]
      %v1777 = vperm.slane %v1776, 0
      %v1779 = vsel %vm376, %v1771, 0
      %1781 = vmatpush.msra.mxu0 0.0
      %1782 = vmatpush.msra.mxu0 0.0
      %1783 = vmatpush.msra.mxu0 0.0
      %1784 = vmatpush.msra.mxu0 0.0
      %1785 = vmatpush.msra.mxu0 0.0
      %1786 = vmatpush.msra.mxu0 0.0
      %1787 = vmatpush.msra.mxu0 0.0
      %1788 = vmatpush.msra.mxu0 0.0
      %1789 = vmatpush.msra.mxu0 0.0
      %1790 = vmatpush.msra.mxu0 0.0
      %1791 = vmatpush.msra.mxu0 0.0
      %1792 = vmatpush.msra.mxu0 0.0
      %1793 = vmatpush.msra.mxu0 %v1775
      %1794 = vmatpush.msra.mxu0 %v1774
      %1795 = vmatpush.msra.mxu0 %v1773
      %1796 = vmatpush.msra.mxu0 %v1772
      %1797 = vmatmul.f32.gmra.mxu0 %v1779
      %v1798 = vpop.f32.mrf.mxu0
      %v1799 = vadd.f32 %v1777, %v1798
      %1800 = vdwg.mxu0
      %v1801 = vmul.f32 %v1799, 0.5
      %v1802 = vmul.f32 %v1799, 0.70710677
      %vm1803 = vcmp.ge.f32.partialorder %v1802, 0.0
      %v1804 = vsel %vm1803, 1.0, -1.0
      %v1805 = vand.u32 2147483647, %v1802
      %v1806 = vmul.f32 %v1805, 0.3275911
      %v1807 = vadd.f32 %v1806, 1.0
      %v1808 = vrcp.pop %v1807
      %v1809 = vmul.f32 %v1807, %v1808
      %v1810 = vsub.f32 1.0, %v1809
      %v1811 = vmul.f32 %v1808, %v1810
      %v1812 = vadd.f32 %v1808, %v1811
      %vm1813 = vweird.f32 %v1807
      %vm1814 = vweird.f32 %v1808
      %vm1815 = vmor %vm1813, %vm1814
      %v1816 = vsel %vm1815, %v1808, %v1812
      %v1817 = vand.u32 2147483647, %v1807
      %vm1818 = vcmp.eq.f32.partialorder %v1817, 8.507059e+37
      %v1819 = vand.u32 %v1807, 2147483648
      %v1820 = vor.u32 1.1754944e-38, %v1819
      %v1821 = vsel %vm1818, %v1820, %v1816
      %v1822 = vmul.f32 1.0, %v1821
      %v1823 = vmul.f32 %v1822, 1.0614054
      %v1824 = vadd.f32 %v1823, -1.4531521
      %v1825 = vmul.f32 %v1824, %v1822
      %v1826 = vadd.f32 %v1825, 1.4214138
      %v1827 = vmul.f32 %v1826, %v1822
      %v1828 = vadd.f32 %v1827, -0.28449672
      %v1829 = vmul.f32 %v1828, %v1822
      %v1830 = vadd.f32 %v1829, 0.2548296
      %v1831 = vmul.f32 %v1830, %v1822
      %v1832 = vsub.f32 0.0, %v1805
      %v1833 = vmul.f32 %v1832, %v1805
      %v1834 = vmul.f32 %v1833, 1.442695
      %v1835 = vpow.pop %v1834
      %v1836 = vmul.f32 %v1831, %v1835
      %v1837 = vsub.f32 1.0, %v1836
      %v1838 = vmul.f32 %v1804, %v1837
      %v1839 = vadd.f32 %v1838, 1.0
      %v1840 = vmul.f32 %v1801, %v1839
      %v1841 = vld [vmem:[%s1080 + $0xa0] sm:$0xff]
      %v1842 = vld [vmem:[%s1080 + $0xa8] sm:$0xff]
      %v1843 = vld [vmem:[%s1080 + $0xb0] sm:$0xff]
      %v1844 = vld [vmem:[%s1080 + $0xb8] sm:$0xff]
      %v1845 = vld [vmem:[%s1080 + $0xc0] sm:$0xff]
      %v1846 = vld [vmem:[%s1080 + $0xc8] sm:$0xff]
      %v1847 = vld [vmem:[%s1080 + $0xd0] sm:$0xff]
      %v1848 = vld [vmem:[%s1080 + $0xd8] sm:$0xff]
      %v1849 = vld [vmem:[%s1080 + $0xe0] sm:$0xff]
      %v1850 = vld [vmem:[%s1080 + $0xe8] sm:$0xff]
      %v1851 = vld [vmem:[%s1080 + $0xf0] sm:$0xff]
      %v1852 = vld [vmem:[%s1080 + $0xf8] sm:$0xff]
      %v1853 = vld [vmem:[%s1080 + $0x100] sm:$0xff]
      %v1854 = vld [vmem:[%s1080 + $0x108] sm:$0xff]
      %v1855 = vld [vmem:[%s1080 + $0x110] sm:$0xff]
      %v1856 = vld [vmem:[%s1080 + $0x118] sm:$0xff]
      %1857 = vmatpush.msra.mxu0 %v1856
      %1858 = vmatpush.msra.mxu0 %v1855
      %1859 = vmatpush.msra.mxu0 %v1854
      %1860 = vmatpush.msra.mxu0 %v1853
      %1861 = vmatpush.msra.mxu0 %v1852
      %1862 = vmatpush.msra.mxu0 %v1851
      %1863 = vmatpush.msra.mxu0 %v1850
      %1864 = vmatpush.msra.mxu0 %v1849
      %1865 = vmatpush.msra.mxu0 %v1848
      %1866 = vmatpush.msra.mxu0 %v1847
      %1867 = vmatpush.msra.mxu0 %v1846
      %1868 = vmatpush.msra.mxu0 %v1845
      %1869 = vmatpush.msra.mxu0 %v1844
      %1870 = vmatpush.msra.mxu0 %v1843
      %1871 = vmatpush.msra.mxu0 %v1842
      %1872 = vmatpush.msra.mxu0 %v1841
      %1873 = vmatmul.f32.gmra.mxu0 %v1840
      %v1874 = vpop.f32.mrf.mxu0
      %v1875 = vadd.f32 0.0, %v1874
      %1876 = vdwg.mxu0
      %v1877 = vadd.f32 %v1743, %v1875
      %v1878 = vld [vmem:[%s1080 + $0x125] sm:$0x1]
      %v1879 = vperm.slane %v1878, 0
      %v1880 = vadd.f32 %v1877, %v1879
      %v1881 = vld [vmem:[%s1 + $0xca] sm:$0x1]
      %v1882 = vld [vmem:[%s1 + $0xcb] sm:$0x1]
      %vm1883 = vcmask 253952
      %v1884 = vsel %vm1883, %v1880, 0.0
      %1885 = vadd.xlane.f32.xlu0 %v1884
      %v1886 = vpop.xlane.xlu0 %1885
      %v1887 = vmul.f32 %v1886, %v252
      %v1888 = vsub.f32 %v1880, %v1887
      %v1889 = vmul.f32 %v1888, %v1888
      %v1890 = vsel %vm1883, %v1889, 0.0
      %1891 = vadd.xlane.f32.xlu0 %v1890
      %v1892 = vpop.xlane.xlu0 %1891
      %v1893 = vmul.f32 %v1892, %v252
      %v1894 = vadd.f32 %v1893, 1e-05
      %v1895 = vrsqrt.pop %v1894
      %v1896 = vmul.f32 %v1895, %v1894
      %v1897 = vmul.f32 %v1896, %v1895
      %v1898 = vmul.f32 0.5, %v1897
      %v1899 = vsub.f32 1.5, %v1898
      %v1900 = vmul.f32 %v1895, %v1899
      %vm1901 = vweird.f32 %v1894
      %vm1902 = vweird.f32 %v1895
      %vm1903 = vmor %vm1901, %vm1902
      %v1904 = vsel %vm1903, %v1895, %v1900
      %v1905 = vmul.f32 %v1888, %v1904
      %v1906 = vmul.f32 %v1905, %v1881
      %v1907 = vadd.f32 %v1906, %v1882
      %v1908 = vld [vmem:[%s1 + $0xd0] sm:$0xff]
      %v1909 = vld [vmem:[%s1 + $0xd8] sm:$0xff]
      %v1910 = vld [vmem:[%s1 + $0xe0] sm:$0xff]
      %v1911 = vld [vmem:[%s1 + $0xe8] sm:$0xff]
      %v1913 = vsel %vm376, %v1907, 0
      %1915 = vmatpush.msra.mxu0 0.0
      %1916 = vmatpush.msra.mxu0 0.0
      %1917 = vmatpush.msra.mxu0 0.0
      %1918 = vmatpush.msra.mxu0 0.0
      %1919 = vmatpush.msra.mxu0 0.0
      %1920 = vmatpush.msra.mxu0 0.0
      %1921 = vmatpush.msra.mxu0 0.0
      %1922 = vmatpush.msra.mxu0 0.0
      %1923 = vmatpush.msra.mxu0 0.0
      %1924 = vmatpush.msra.mxu0 0.0
      %1925 = vmatpush.msra.mxu0 0.0
      %1926 = vmatpush.msra.mxu0 0.0
      %1927 = vmatpush.msra.mxu0 %v1911
      %1928 = vmatpush.msra.mxu0 %v1910
      %1929 = vmatpush.msra.mxu0 %v1909
      %1930 = vmatpush.msra.mxu0 %v1908
      %1931 = vmatmul.f32.gmra.mxu0 %v1913
      %v1932 = vpop.f32.mrf.mxu0
      %v1933 = vadd.f32 0.0, %v1932
      %1934 = vdwg.mxu0
      %v1935 = vperm.slane %v1933, 0
      %1936 = vst [vmem:[%s168] sm:$0xff] %v1935
      %p1937 = scmp.lt.s32.totalorder %s14, 1
      %s1938 = scalar_select %p1937, %s14, 1
      %s1939 = smul.addr %s1938, 8
      %s1940 = scalar_lea.vmem %s3, %s1939
      // Predicated region
      $region33: #{visual_transformer_forward.1} parent=31 // pred_check
        %p1941 = pneg %p100
      $region34: #{visual_transformer_forward.1} parent=31 // pred_check_branch
        %1943 = sbr.rel (%p1941) target = $region36
      $region35: #{visual_transformer_forward.1} parent=31 // pred_region
        _
      $region36: #{visual_transformer_forward.1} parent=31 // pred_fallthru
        _
    $region32: #{visual_transformer_forward.1} parent=5 // pred_fallthru
      _
    %p1944 = scmp.le.s32.totalorder 2, %s9
    // Predicated region
    $region37: #{visual_transformer_forward.1} parent=5 // pred_check
      %p1945 = pneg %p1944
    $region38: #{visual_transformer_forward.1} parent=5 // pred_check_branch
      %1947 = sbr.rel (%p1945) target = $region40
    $region39: #{visual_transformer_forward.1} parent=5 // pred_region
      %s1948 = ssub.s32 %s9, 2
      // Predicated region
      $region41: #{visual_transformer_forward.1} parent=39 // pred_check
        %p1949 = pneg %p106
      $region42: #{visual_transformer_forward.1} parent=39 // pred_check_branch
        %1951 = sbr.rel (%p1949) target = $region44
      $region43: #{visual_transformer_forward.1} parent=39 // pred_region
        %p1952 = scmp.lt.s32.totalorder %s15, 1
        %s1953 = scalar_select %p1952, %s15, 1
        %s1954 = smul.addr %s1953, 8
        %s1955 = scalar_lea.vmem %s3, %s1954
      $region44: #{visual_transformer_forward.1} parent=39 // pred_fallthru
        _
    $region40: #{visual_transformer_forward.1} parent=5 // pred_fallthru
      _
  $region6: #{visual_transformer_forward.1} parent=0 // loop_footer
    %s13 = sadd.s32 1, %s9
  $region7: #{visual_transformer_forward.1} parent=0 // loop_footer_branch
    %8 = sbr.rel target = $region3
  $region8: #{visual_transformer_forward.1} parent=0 // loop_exit
    _

</llo_original>
